<compile_context>
chip_gen: v6e
topology: v6e:2x2x1
jax: 0.10.0
libtpu: 0.0.40
codegen_flags: <defaults>
</compile_context>

<pallas_src>
import functools
import math

import jax
import jax.numpy as jnp
from jax.experimental import pallas as pl
from jax.experimental.pallas import tpu as pltpu


def _gelu_tanh(v):
    c = jnp.float32(0.7978845608028654)  # sqrt(2/pi)
    return 0.5 * v * (1.0 + jnp.tanh(c * (v + 0.044715 * v * v * v)))


def _up_kernel(x_ref, wt_ref, bt_ref, wband_ref, shift_ref, te_ref, o_ref,
               *, B, H, W, Cin, Cout):
    f32, bf16 = jnp.float32, jnp.bfloat16
    H2, W2 = 2 * H, 2 * W
    WC = W2 * Cout
    M = B * H2
    inv_sqrt2 = jnp.float32(1.0 / math.sqrt(2.0))

    # Row-within-sample masks for the +-1 row shifts of the dy-fused 3x3 conv.
    row = jax.lax.broadcasted_iota(jnp.int32, (M, WC), 0) % H2
    first_row = row == 0
    last_row = row == H2 - 1

    # ---- ConvTranspose2d(Cin, Cout, kernel=2, stride=2): one lane-packed bf16 matmul
    #      (B*H, W*Cin) x (W*Cin, 2*W2*Cout).  Each output row holds the packed even row
    #      in its first W2*Cout lanes and the odd row in the last W2*Cout lanes, so a
    #      plain reshape produces the interleaved (B, H2, W2*Cout) slab.
    x2d = x_ref[...].reshape(B * H, W * Cin).astype(bf16)
    up = jnp.dot(x2d, wt_ref[...], preferred_element_type=f32)        # (B*H, 2*WC)
    u = up.reshape(B, H2, WC) + bt_ref[...]                           # + bias (packed)

    shift = shift_ref[...]      # (4, WC) folded-BN shift (conv bias folded in)
    te = te_ref[...]            # (B, 4, WC) hoisted time-embedding MLP outputs

    def conv3x3(a, k):
        # 3x3 SAME conv + folded BatchNorm2d: all three dy taps fused into one bf16
        # matmul (B*H2, WC) x (WC, 3*WC); BN scale is pre-folded into the weights.
        a2 = a.reshape(M, WC).astype(bf16)
        y = jnp.dot(a2, wband_ref[k], preferred_element_type=f32)     # (M, 3*WC)
        mid = y[:, WC:2 * WC]
        top = jnp.where(first_row, 0.0, pltpu.roll(y[:, :WC], 1, axis=0))
        bot = jnp.where(last_row, 0.0, pltpu.roll(y[:, 2 * WC:], M - 1, axis=0))
        return (mid + top + bot).reshape(B, H2, WC) + shift[k]

    def res_block(a, k0):
        # TemporalResidualConvBlock with in_channels == out_channels (skip = Identity).
        h = _gelu_tanh(conv3x3(a, k0)) + te[:, k0, :][:, None, :]
        h = _gelu_tanh(conv3x3(h, k0 + 1)) + te[:, k0 + 1, :][:, None, :]
        return (h + a) * inv_sqrt2

    h = res_block(u, 0)          # conv_block1
    h = res_block(h, 2)          # conv_block2
    o_ref[...] = h.astype(o_ref.dtype)


def prepare_up_params(p, H, W):
    """Hoisted, once-per-parameter-set weight preparation (kept out of the forward path)."""
    f32, bf16 = jnp.float32, jnp.bfloat16
    Cin, Cout = p["w_up"].shape[0], p["w_up"].shape[1]
    W2 = 2 * W
    WC = W2 * Cout
    keys = ("1a", "1b", "2a", "2b")  # conv_block1.{conv_1,conv_2}, conv_block2.{conv_1,conv_2}

    # ConvTranspose2d weight (Cin, Cout, 2, 2) -> lane-packed block matrix (W*Cin, 2*WC).
    j = jnp.arange(W)[:, None, None]
    dx = jnp.arange(2)[None, :, None]
    q = jnp.arange(W2)[None, None, :]
    ind_t = (q == 2 * j + dx).astype(f32)                              # (W, 2, W2)
    wt = jnp.einsum("jxq,ioyx->jiyqo", ind_t, p["w_up"].astype(f32))
    wt = wt.reshape(W * Cin, 2 * WC).astype(bf16)
    bt = jnp.tile(p["b_up"].astype(f32), W2).reshape(1, WC)

    # 3x3 convs -> column-halo-free, dy-fused band matrices (4, WC, 3*WC) with the
    # folded BatchNorm scale baked into the output-channel columns.
    pcol = jnp.arange(W2)[:, None, None]
    xk = jnp.arange(3)[None, :, None]
    qcol = jnp.arange(W2)[None, None, :]
    ind_c = (pcol == qcol + xk - 1).astype(f32)                        # (W2, 3, W2)
    wbs, shifts = [], []
    for k in keys:
        wb = jnp.einsum("pxq,yxio->piyqo", ind_c, p["w" + k].astype(f32))
        wb = wb * p["s" + k].astype(f32)                               # fold BN scale
        wbs.append(wb.reshape(WC, 3 * WC))
        shifts.append(jnp.tile(p["c" + k].astype(f32), W2))

    return {
        "wt": wt, "bt": bt,
        "wband": jnp.stack(wbs).astype(bf16),                          # (4, WC, 3*WC) bf16
        "shift": jnp.stack(shifts),                                    # (4, WC) f32
        "tlw": jnp.stack([p["lw" + k] for k in keys]).astype(f32),     # (4, Cout, Tc)
        "tts": jnp.stack([p["ts" + k] for k in keys]).astype(f32),     # (4, Cout)
        "ttc": jnp.stack([p["tc" + k] for k in keys]).astype(f32),     # (4, Cout)
        "Cout": int(Cout),
    }


def up_forward(x_nchw, skip_nchw, t, prep, *, block_b=8):
    N, cx, H, W = x_nchw.shape
    Cin = cx + skip_nchw.shape[1]
    Cout = prep["Cout"]
    H2, W2 = 2 * H, 2 * W
    WC = W2 * Cout

    # --- per-call layout prep (lane-dense slabs + hoisted time MLPs) ---------------------
    xcat = jnp.concatenate([x_nchw, skip_nchw], axis=1)                # torch.cat(dim=1)
    x_pk = jnp.transpose(xcat, (0, 2, 3, 1)).reshape(N, H, W * Cin)    # (N, H, W*Cin)

    # Time-embedding MLPs: Linear -> folded BN1d -> GELU (Dropout eval = identity).
    tf = t.astype(jnp.float32)
    te = _gelu_tanh(jnp.einsum("nt,kct->nkc", tf, prep["tlw"])
                    * prep["tts"][None] + prep["ttc"][None])           # (N, 4, Cout)
    te_pk = jnp.tile(te, (1, 1, W2))                                   # (N, 4, WC)

    # Batch block: amortize step overhead / fill MXU M, keep >= 2 steps for megacore.
    B = min(block_b, N)
    if N >= 2 and N // B < 2:
        B = max(1, N // 2)
    steps = -(-N // B)
    n_pad = steps * B
    if n_pad != N:
        x_pk = jnp.concatenate(
            [x_pk, jnp.zeros((n_pad - N, H, W * Cin), x_pk.dtype)], axis=0)
        te_pk = jnp.concatenate(
            [te_pk, jnp.zeros((n_pad - N, 4, WC), te_pk.dtype)], axis=0)

    kernel = functools.partial(_up_kernel, B=B, H=H, W=W, Cin=Cin, Cout=Cout)
    out = pl.pallas_call(
        kernel,
        out_shape=jax.ShapeDtypeStruct((n_pad, H2, WC), x_nchw.dtype),
        grid_spec=pltpu.PrefetchScalarGridSpec(
            num_scalar_prefetch=0,
            grid=(steps,),
            in_specs=[
                pl.BlockSpec((B, H, W * Cin), lambda n: (n, 0, 0)),
                pl.BlockSpec(prep["wt"].shape, lambda n: (0, 0)),
                pl.BlockSpec(prep["bt"].shape, lambda n: (0, 0)),
                pl.BlockSpec(prep["wband"].shape, lambda n: (0, 0, 0)),
                pl.BlockSpec(prep["shift"].shape, lambda n: (0, 0)),
                pl.BlockSpec((B, 4, WC), lambda n: (n, 0, 0)),
            ],
            out_specs=pl.BlockSpec((B, H2, WC), lambda n: (n, 0, 0)),
        ),
        compiler_params=pltpu.CompilerParams(dimension_semantics=("parallel",)),
    )(x_pk, prep["wt"], prep["bt"], prep["wband"], prep["shift"], te_pk)

    out = out[:N]
    return jnp.transpose(out.reshape(N, H2, W2, Cout), (0, 3, 1, 2))   # back to NCHW


def init_params(key, in_ch, out_ch, time_ch, eps=1e-5):
    ks = iter(jax.random.split(key, 64))

    def nrm(shape, scale=0.1):
        return (scale * jax.random.normal(next(ks), shape)).astype(jnp.float32)

    def fold_bn(bias, c):
        gamma = 1.0 + nrm((c,))
        beta = nrm((c,))
        rmean = nrm((c,))
        rvar = 0.5 + jax.random.uniform(next(ks), (c,), dtype=jnp.float32)
        s = gamma / jnp.sqrt(rvar + eps)
        return s, (bias - rmean) * s + beta

    p = {"w_up": nrm((in_ch, out_ch, 2, 2)),     # ConvTranspose2d weight (in, out, kh, kw)
         "b_up": nrm((out_ch,))}
    for k in ("1a", "1b", "2a", "2b"):
        cw = nrm((out_ch, out_ch, 3, 3))         # Conv2d weight OIHW
        cb = nrm((out_ch,))
        s, c = fold_bn(cb, out_ch)
        p["w" + k] = jnp.transpose(cw, (2, 3, 1, 0))   # HWIO
        p["s" + k], p["c" + k] = s, c
        lw = nrm((out_ch, time_ch))              # Linear weight (out, in)
        lb = nrm((out_ch,))
        ts, tc = fold_bn(lb, out_ch)
        p["lw" + k], p["ts" + k], p["tc" + k] = lw, ts, tc
    return p


def reference_forward(x_nchw, skip_nchw, t, p):
    f32 = jnp.float32
    N, _, H, W = x_nchw.shape
    Cout = p["b_up"].shape[0]

    xcat = jnp.concatenate([x_nchw, skip_nchw], axis=1)
    x = jnp.transpose(xcat, (0, 2, 3, 1)).astype(f32)                  # NHWC

    # ConvTranspose2d(kernel=2, stride=2): non-overlapping 2x2 output blocks.
    up = jnp.einsum("nhwi,ioyx->nhywxo", x, p["w_up"].astype(f32))
    up = up.reshape(N, 2 * H, 2 * W, Cout) + p["b_up"]

    def conv(a, w):
        return jax.lax.conv_general_dilated(
            a, w.astype(f32), (1, 1), "SAME",
            dimension_numbers=("NHWC", "HWIO", "NHWC"))

    def temb(k):
        return _gelu_tanh(t.astype(f32) @ p["lw" + k].T * p["ts" + k] + p["tc" + k])

    def block(u, ka, kb):
        h = _gelu_tanh(conv(u, p["w" + ka]) * p["s" + ka] + p["c" + ka])
        h = h + temb(ka)[:, None, None, :]
        h = _gelu_tanh(conv(h, p["w" + kb]) * p["s" + kb] + p["c" + kb])
        h = h + temb(kb)[:, None, None, :]
        return (h + u) / math.sqrt(2.0)      # same_channels residual block

    h = block(up, "1a", "1b")
    h = block(h, "2a", "2b")
    return jnp.transpose(h, (0, 3, 1, 2))


if __name__ == "__main__":
    N, Cout, Tc, H, W = 2, 8, 32, 8, 8
    Cin = 2 * Cout                      # Up concatenates x with the encoder skip
    key = jax.random.PRNGKey(0)
    kx, ks, kt, kp = jax.random.split(key, 4)
    x = jax.random.normal(kx, (N, Cout, H, W), dtype=jnp.float32)
    skip = jax.random.normal(ks, (N, Cout, H, W), dtype=jnp.float32)
    t = jax.random.normal(kt, (N, Tc), dtype=jnp.float32)
    params = init_params(kp, Cin, Cout, Tc)

    prep = prepare_up_params(params, H, W)   # once per parameter set (hoisted weight prep)
    out = jax.block_until_ready(up_forward(x, skip, t, prep))
    assert out.shape == (N, Cout, 2 * H, 2 * W), out.shape

    ref = jax.block_until_ready(reference_forward(x, skip, t, params))
    max_diff = float(jnp.max(jnp.abs(out - ref)))
    # bf16 MXU operands (f32 accumulation) vs. pure-f32 reference.
    assert max_diff < 5e-2, f"mismatch vs reference: {max_diff}"

    print("KERNEL_OK")
</pallas_src>

<mosaic_0001>
module attributes {stable_mosaic.version = 11 : i64} {
  func.func @_up_kernel(%arg0: i32, %arg1: memref<1x8x128xf32, #tpu.memory_space<vmem>>, %arg2: memref<128x256xbf16, #tpu.memory_space<vmem>>, %arg3: memref<1x128xf32, #tpu.memory_space<vmem>>, %arg4: memref<4x128x384xbf16, #tpu.memory_space<vmem>>, %arg5: memref<4x128xf32, #tpu.memory_space<vmem>>, %arg6: memref<1x4x128xf32, #tpu.memory_space<vmem>>, %arg7: memref<1x16x128xf32, #tpu.memory_space<vmem>>) attributes {dimension_semantics = [#tpu.dimension_semantics<parallel>], iteration_bounds = array<i64: 2>, scalar_prefetch = 0 : i64, scratch_operands = 0 : i64, tpu.core_type = #tpu.core_type<tc>, window_params = [{transform_indices = @transform_0, window_bounds = array<i64: 1, 8, 128>}, {pipeline_mode = #tpu.pipeline_mode<synchronous>, transform_indices = @transform_1, window_bounds = array<i64: 128, 256>}, {pipeline_mode = #tpu.pipeline_mode<synchronous>, transform_indices = @transform_2, window_bounds = array<i64: 1, 128>}, {pipeline_mode = #tpu.pipeline_mode<synchronous>, transform_indices = @transform_3, window_bounds = array<i64: 4, 128, 384>}, {pipeline_mode = #tpu.pipeline_mode<synchronous>, transform_indices = @transform_4, window_bounds = array<i64: 4, 128>}, {transform_indices = @transform_5, window_bounds = array<i64: 1, 4, 128>}, {transform_indices = @transform_6, window_bounds = array<i64: 1, 16, 128>}]} {
    %0 = tpu.iota {dimensions = array<i32: 0>} : vector<16x128xi32>
    %c16_i32 = arith.constant 16 : i32
    %c0_i32 = arith.constant 0 : i32
    %1 = arith.cmpi eq, %c16_i32, %c0_i32 : i32
    %c1_i32 = arith.constant 1 : i32
    %2 = arith.select %1, %c1_i32, %c16_i32 : i32
    %3 = vector.broadcast %2 : i32 to vector<16x128xi32>
    %4 = arith.remsi %0, %3 : vector<16x128xi32>
    %c0_i32_0 = arith.constant 0 : i32
    %5 = vector.broadcast %c0_i32_0 : i32 to vector<16x128xi32>
    %6 = arith.cmpi ne, %4, %5 : vector<16x128xi32>
    %c0_i32_1 = arith.constant 0 : i32
    %7 = vector.broadcast %c0_i32_1 : i32 to vector<16x128xi32>
    %8 = arith.cmpi slt, %4, %7 : vector<16x128xi32>
    %c0_i32_2 = arith.constant 0 : i32
    %9 = arith.cmpi slt, %2, %c0_i32_2 : i32
    %10 = vector.broadcast %9 : i1 to vector<16x128xi1>
    %11 = vector.broadcast %10 : vector<16x128xi1> to vector<16x128xi1>
    %12 = arith.xori %8, %11 : vector<16x128xi1>
    %13 = arith.andi %12, %6 : vector<16x128xi1>
    %14 = vector.broadcast %2 : i32 to vector<16x128xi32>
    %15 = arith.addi %4, %14 : vector<16x128xi32>
    %16 = arith.select %13, %15, %4 : vector<16x128xi1>, vector<16x128xi32>
    %c0_i32_3 = arith.constant 0 : i32
    %17 = vector.broadcast %c0_i32_3 : i32 to vector<16x128xi32>
    %18 = arith.cmpi eq, %16, %17 : vector<16x128xi32>
    %c15_i32 = arith.constant 15 : i32
    %19 = vector.broadcast %c15_i32 : i32 to vector<16x128xi32>
    %20 = arith.cmpi eq, %16, %19 : vector<16x128xi32>
    %c0 = arith.constant 0 : index
    %c0_4 = arith.constant 0 : index
    %c0_5 = arith.constant 0 : index
    %21 = vector.load %arg1[%c0, %c0_4, %c0_5] : memref<1x8x128xf32, #tpu.memory_space<vmem>>, vector<1x8x128xf32>
    %22 = vector.shape_cast %21 : vector<1x8x128xf32> to vector<8x128xf32>
    %23 = arith.truncf %22 : vector<8x128xf32> to vector<8x128xbf16>
    %c0_6 = arith.constant 0 : index
    %c0_7 = arith.constant 0 : index
    %24 = vector.load %arg2[%c0_6, %c0_7] : memref<128x256xbf16, #tpu.memory_space<vmem>>, vector<128x256xbf16>
    %cst = arith.constant dense<0.000000e+00> : vector<8x256xf32>
    %25 = tpu.matmul %23, %24, %cst {dimension_numbers = #tpu.dot_dimension_numbers<[1], [0], [0], [1], [0, 0, 1, 1], [], []>} : vector<8x128xbf16>, vector<128x256xbf16>, vector<8x256xf32> -> vector<8x256xf32>
    %26 = vector.shape_cast %25 : vector<8x256xf32> to vector<1x16x128xf32>
    %c0_8 = arith.constant 0 : index
    %c0_9 = arith.constant 0 : index
    %27 = vector.load %arg3[%c0_8, %c0_9] : memref<1x128xf32, #tpu.memory_space<vmem>>, vector<1x128xf32>
    %28 = vector.shape_cast %27 : vector<1x128xf32> to vector<1x1x128xf32>
    %29 = vector.broadcast %28 : vector<1x1x128xf32> to vector<1x16x128xf32>
    %30 = arith.addf %26, %29 : vector<1x16x128xf32>
    %c0_10 = arith.constant 0 : index
    %c0_11 = arith.constant 0 : index
    %31 = vector.load %arg5[%c0_10, %c0_11] : memref<4x128xf32, #tpu.memory_space<vmem>>, vector<4x128xf32>
    %c0_12 = arith.constant 0 : index
    %c0_13 = arith.constant 0 : index
    %c0_14 = arith.constant 0 : index
    %32 = vector.load %arg6[%c0_12, %c0_13, %c0_14] : memref<1x4x128xf32, #tpu.memory_space<vmem>>, vector<1x4x128xf32>
    %33 = vector.shape_cast %30 : vector<1x16x128xf32> to vector<16x128xf32>
    %34 = arith.truncf %33 : vector<16x128xf32> to vector<16x128xbf16>
    %c0_15 = arith.constant 0 : index
    %c0_16 = arith.constant 0 : index
    %c0_17 = arith.constant 0 : index
    %35 = vector.load %arg4[%c0_15, %c0_16, %c0_17] : memref<4x128x384xbf16, #tpu.memory_space<vmem>>, vector<1x128x384xbf16>
    %36 = vector.shape_cast %35 : vector<1x128x384xbf16> to vector<128x384xbf16>
    %cst_18 = arith.constant dense<0.000000e+00> : vector<16x384xf32>
    %37 = tpu.matmul %34, %36, %cst_18 {dimension_numbers = #tpu.dot_dimension_numbers<[1], [0], [0], [1], [0, 0, 1, 1], [], []>} : vector<16x128xbf16>, vector<128x384xbf16>, vector<16x384xf32> -> vector<16x384xf32>
    %38 = vector.extract_strided_slice %37 {offsets = [0, 128], sizes = [16, 128], strides = [1, 1]} : vector<16x384xf32> to vector<16x128xf32>
    %39 = vector.extract_strided_slice %37 {offsets = [0, 0], sizes = [16, 128], strides = [1, 1]} : vector<16x384xf32> to vector<16x128xf32>
    %c1_i32_19 = arith.constant 1 : i32
    %40 = tpu.dynamic_rotate %39 by %c1_i32_19 dim 0 : vector<16x128xf32>, i32 -> vector<16x128xf32>
    %cst_20 = arith.constant 0.000000e+00 : f32
    %41 = vector.broadcast %cst_20 : f32 to vector<16x128xf32>
    %42 = arith.select %18, %41, %40 : vector<16x128xi1>, vector<16x128xf32>
    %43 = vector.extract_strided_slice %37 {offsets = [0, 256], sizes = [16, 128], strides = [1, 1]} : vector<16x384xf32> to vector<16x128xf32>
    %c15_i32_21 = arith.constant 15 : i32
    %44 = tpu.dynamic_rotate %43 by %c15_i32_21 dim 0 : vector<16x128xf32>, i32 -> vector<16x128xf32>
    %cst_22 = arith.constant 0.000000e+00 : f32
    %45 = vector.broadcast %cst_22 : f32 to vector<16x128xf32>
    %46 = arith.select %20, %45, %44 : vector<16x128xi1>, vector<16x128xf32>
    %47 = arith.addf %38, %42 : vector<16x128xf32>
    %48 = arith.addf %47, %46 : vector<16x128xf32>
    %49 = vector.shape_cast %48 : vector<16x128xf32> to vector<1x16x128xf32>
    %50 = vector.extract_strided_slice %31 {offsets = [0, 0], sizes = [1, 128], strides = [1, 1]} : vector<4x128xf32> to vector<1x128xf32>
    %51 = vector.shape_cast %50 : vector<1x128xf32> to vector<128xf32>
    %52 = vector.shape_cast %51 : vector<128xf32> to vector<1x1x128xf32>
    %53 = vector.broadcast %52 : vector<1x1x128xf32> to vector<1x16x128xf32>
    %54 = arith.addf %49, %53 : vector<1x16x128xf32>
    %cst_23 = arith.constant 5.000000e-01 : f32
    %55 = vector.broadcast %cst_23 : f32 to vector<1x16x128xf32>
    %56 = arith.mulf %55, %54 : vector<1x16x128xf32>
    %cst_24 = arith.constant 4.471500e-02 : f32
    %57 = vector.broadcast %cst_24 : f32 to vector<1x16x128xf32>
    %58 = arith.mulf %57, %54 : vector<1x16x128xf32>
    %59 = arith.mulf %58, %54 : vector<1x16x128xf32>
    %60 = arith.mulf %59, %54 : vector<1x16x128xf32>
    %61 = arith.addf %54, %60 : vector<1x16x128xf32>
    %cst_25 = arith.constant 0.797884583 : f32
    %62 = vector.broadcast %cst_25 : f32 to vector<1x16x128xf32>
    %63 = arith.mulf %62, %61 : vector<1x16x128xf32>
    %64 = math.tanh %63 : vector<1x16x128xf32>
    %cst_26 = arith.constant 1.000000e+00 : f32
    %65 = vector.broadcast %cst_26 : f32 to vector<1x16x128xf32>
    %66 = arith.addf %65, %64 : vector<1x16x128xf32>
    %67 = arith.mulf %56, %66 : vector<1x16x128xf32>
    %68 = vector.extract_strided_slice %32 {offsets = [0, 0, 0], sizes = [1, 1, 128], strides = [1, 1, 1]} : vector<1x4x128xf32> to vector<1x1x128xf32>
    %69 = vector.shape_cast %68 : vector<1x1x128xf32> to vector<1x128xf32>
    %70 = vector.shape_cast %69 : vector<1x128xf32> to vector<1x1x128xf32>
    %71 = vector.broadcast %70 : vector<1x1x128xf32> to vector<1x16x128xf32>
    %72 = arith.addf %67, %71 : vector<1x16x128xf32>
    %73 = vector.shape_cast %72 : vector<1x16x128xf32> to vector<16x128xf32>
    %74 = arith.truncf %73 : vector<16x128xf32> to vector<16x128xbf16>
    %c1 = arith.constant 1 : index
    %c0_27 = arith.constant 0 : index
    %c0_28 = arith.constant 0 : index
    %75 = vector.load %arg4[%c1, %c0_27, %c0_28] : memref<4x128x384xbf16, #tpu.memory_space<vmem>>, vector<1x128x384xbf16>
    %76 = vector.shape_cast %75 : vector<1x128x384xbf16> to vector<128x384xbf16>
    %cst_29 = arith.constant dense<0.000000e+00> : vector<16x384xf32>
    %77 = tpu.matmul %74, %76, %cst_29 {dimension_numbers = #tpu.dot_dimension_numbers<[1], [0], [0], [1], [0, 0, 1, 1], [], []>} : vector<16x128xbf16>, vector<128x384xbf16>, vector<16x384xf32> -> vector<16x384xf32>
    %78 = vector.extract_strided_slice %77 {offsets = [0, 128], sizes = [16, 128], strides = [1, 1]} : vector<16x384xf32> to vector<16x128xf32>
    %79 = vector.extract_strided_slice %77 {offsets = [0, 0], sizes = [16, 128], strides = [1, 1]} : vector<16x384xf32> to vector<16x128xf32>
    %c1_i32_30 = arith.constant 1 : i32
    %80 = tpu.dynamic_rotate %79 by %c1_i32_30 dim 0 : vector<16x128xf32>, i32 -> vector<16x128xf32>
    %cst_31 = arith.constant 0.000000e+00 : f32
    %81 = vector.broadcast %cst_31 : f32 to vector<16x128xf32>
    %82 = arith.select %18, %81, %80 : vector<16x128xi1>, vector<16x128xf32>
    %83 = vector.extract_strided_slice %77 {offsets = [0, 256], sizes = [16, 128], strides = [1, 1]} : vector<16x384xf32> to vector<16x128xf32>
    %c15_i32_32 = arith.constant 15 : i32
    %84 = tpu.dynamic_rotate %83 by %c15_i32_32 dim 0 : vector<16x128xf32>, i32 -> vector<16x128xf32>
    %cst_33 = arith.constant 0.000000e+00 : f32
    %85 = vector.broadcast %cst_33 : f32 to vector<16x128xf32>
    %86 = arith.select %20, %85, %84 : vector<16x128xi1>, vector<16x128xf32>
    %87 = arith.addf %78, %82 : vector<16x128xf32>
    %88 = arith.addf %87, %86 : vector<16x128xf32>
    %89 = vector.shape_cast %88 : vector<16x128xf32> to vector<1x16x128xf32>
    %90 = vector.extract_strided_slice %31 {offsets = [1, 0], sizes = [1, 128], strides = [1, 1]} : vector<4x128xf32> to vector<1x128xf32>
    %91 = vector.shape_cast %90 : vector<1x128xf32> to vector<128xf32>
    %92 = vector.shape_cast %91 : vector<128xf32> to vector<1x1x128xf32>
    %93 = vector.broadcast %92 : vector<1x1x128xf32> to vector<1x16x128xf32>
    %94 = arith.addf %89, %93 : vector<1x16x128xf32>
    %cst_34 = arith.constant 5.000000e-01 : f32
    %95 = vector.broadcast %cst_34 : f32 to vector<1x16x128xf32>
    %96 = arith.mulf %95, %94 : vector<1x16x128xf32>
    %cst_35 = arith.constant 4.471500e-02 : f32
    %97 = vector.broadcast %cst_35 : f32 to vector<1x16x128xf32>
    %98 = arith.mulf %97, %94 : vector<1x16x128xf32>
    %99 = arith.mulf %98, %94 : vector<1x16x128xf32>
    %100 = arith.mulf %99, %94 : vector<1x16x128xf32>
    %101 = arith.addf %94, %100 : vector<1x16x128xf32>
    %cst_36 = arith.constant 0.797884583 : f32
    %102 = vector.broadcast %cst_36 : f32 to vector<1x16x128xf32>
    %103 = arith.mulf %102, %101 : vector<1x16x128xf32>
    %104 = math.tanh %103 : vector<1x16x128xf32>
    %cst_37 = arith.constant 1.000000e+00 : f32
    %105 = vector.broadcast %cst_37 : f32 to vector<1x16x128xf32>
    %106 = arith.addf %105, %104 : vector<1x16x128xf32>
    %107 = arith.mulf %96, %106 : vector<1x16x128xf32>
    %108 = vector.extract_strided_slice %32 {offsets = [0, 1, 0], sizes = [1, 1, 128], strides = [1, 1, 1]} : vector<1x4x128xf32> to vector<1x1x128xf32>
    %109 = vector.shape_cast %108 : vector<1x1x128xf32> to vector<1x128xf32>
    %110 = vector.shape_cast %109 : vector<1x128xf32> to vector<1x1x128xf32>
    %111 = vector.broadcast %110 : vector<1x1x128xf32> to vector<1x16x128xf32>
    %112 = arith.addf %107, %111 : vector<1x16x128xf32>
    %113 = arith.addf %112, %30 : vector<1x16x128xf32>
    %cst_38 = arith.constant 0.707106769 : f32
    %114 = vector.broadcast %cst_38 : f32 to vector<1x16x128xf32>
    %115 = arith.mulf %113, %114 : vector<1x16x128xf32>
    %116 = vector.shape_cast %115 : vector<1x16x128xf32> to vector<16x128xf32>
    %117 = arith.truncf %116 : vector<16x128xf32> to vector<16x128xbf16>
    %c2 = arith.constant 2 : index
    %c0_39 = arith.constant 0 : index
    %c0_40 = arith.constant 0 : index
    %118 = vector.load %arg4[%c2, %c0_39, %c0_40] : memref<4x128x384xbf16, #tpu.memory_space<vmem>>, vector<1x128x384xbf16>
    %119 = vector.shape_cast %118 : vector<1x128x384xbf16> to vector<128x384xbf16>
    %cst_41 = arith.constant dense<0.000000e+00> : vector<16x384xf32>
    %120 = tpu.matmul %117, %119, %cst_41 {dimension_numbers = #tpu.dot_dimension_numbers<[1], [0], [0], [1], [0, 0, 1, 1], [], []>} : vector<16x128xbf16>, vector<128x384xbf16>, vector<16x384xf32> -> vector<16x384xf32>
    %121 = vector.extract_strided_slice %120 {offsets = [0, 128], sizes = [16, 128], strides = [1, 1]} : vector<16x384xf32> to vector<16x128xf32>
    %122 = vector.extract_strided_slice %120 {offsets = [0, 0], sizes = [16, 128], strides = [1, 1]} : vector<16x384xf32> to vector<16x128xf32>
    %c1_i32_42 = arith.constant 1 : i32
    %123 = tpu.dynamic_rotate %122 by %c1_i32_42 dim 0 : vector<16x128xf32>, i32 -> vector<16x128xf32>
    %cst_43 = arith.constant 0.000000e+00 : f32
    %124 = vector.broadcast %cst_43 : f32 to vector<16x128xf32>
    %125 = arith.select %18, %124, %123 : vector<16x128xi1>, vector<16x128xf32>
    %126 = vector.extract_strided_slice %120 {offsets = [0, 256], sizes = [16, 128], strides = [1, 1]} : vector<16x384xf32> to vector<16x128xf32>
    %c15_i32_44 = arith.constant 15 : i32
    %127 = tpu.dynamic_rotate %126 by %c15_i32_44 dim 0 : vector<16x128xf32>, i32 -> vector<16x128xf32>
    %cst_45 = arith.constant 0.000000e+00 : f32
    %128 = vector.broadcast %cst_45 : f32 to vector<16x128xf32>
    %129 = arith.select %20, %128, %127 : vector<16x128xi1>, vector<16x128xf32>
    %130 = arith.addf %121, %125 : vector<16x128xf32>
    %131 = arith.addf %130, %129 : vector<16x128xf32>
    %132 = vector.shape_cast %131 : vector<16x128xf32> to vector<1x16x128xf32>
    %133 = vector.extract_strided_slice %31 {offsets = [2, 0], sizes = [1, 128], strides = [1, 1]} : vector<4x128xf32> to vector<1x128xf32>
    %134 = vector.shape_cast %133 : vector<1x128xf32> to vector<128xf32>
    %135 = vector.shape_cast %134 : vector<128xf32> to vector<1x1x128xf32>
    %136 = vector.broadcast %135 : vector<1x1x128xf32> to vector<1x16x128xf32>
    %137 = arith.addf %132, %136 : vector<1x16x128xf32>
    %cst_46 = arith.constant 5.000000e-01 : f32
    %138 = vector.broadcast %cst_46 : f32 to vector<1x16x128xf32>
    %139 = arith.mulf %138, %137 : vector<1x16x128xf32>
    %cst_47 = arith.constant 4.471500e-02 : f32
    %140 = vector.broadcast %cst_47 : f32 to vector<1x16x128xf32>
    %141 = arith.mulf %140, %137 : vector<1x16x128xf32>
    %142 = arith.mulf %141, %137 : vector<1x16x128xf32>
    %143 = arith.mulf %142, %137 : vector<1x16x128xf32>
    %144 = arith.addf %137, %143 : vector<1x16x128xf32>
    %cst_48 = arith.constant 0.797884583 : f32
    %145 = vector.broadcast %cst_48 : f32 to vector<1x16x128xf32>
    %146 = arith.mulf %145, %144 : vector<1x16x128xf32>
    %147 = math.tanh %146 : vector<1x16x128xf32>
    %cst_49 = arith.constant 1.000000e+00 : f32
    %148 = vector.broadcast %cst_49 : f32 to vector<1x16x128xf32>
    %149 = arith.addf %148, %147 : vector<1x16x128xf32>
    %150 = arith.mulf %139, %149 : vector<1x16x128xf32>
    %151 = vector.extract_strided_slice %32 {offsets = [0, 2, 0], sizes = [1, 1, 128], strides = [1, 1, 1]} : vector<1x4x128xf32> to vector<1x1x128xf32>
    %152 = vector.shape_cast %151 : vector<1x1x128xf32> to vector<1x128xf32>
    %153 = vector.shape_cast %152 : vector<1x128xf32> to vector<1x1x128xf32>
    %154 = vector.broadcast %153 : vector<1x1x128xf32> to vector<1x16x128xf32>
    %155 = arith.addf %150, %154 : vector<1x16x128xf32>
    %156 = vector.shape_cast %155 : vector<1x16x128xf32> to vector<16x128xf32>
    %157 = arith.truncf %156 : vector<16x128xf32> to vector<16x128xbf16>
    %c3 = arith.constant 3 : index
    %c0_50 = arith.constant 0 : index
    %c0_51 = arith.constant 0 : index
    %158 = vector.load %arg4[%c3, %c0_50, %c0_51] : memref<4x128x384xbf16, #tpu.memory_space<vmem>>, vector<1x128x384xbf16>
    %159 = vector.shape_cast %158 : vector<1x128x384xbf16> to vector<128x384xbf16>
    %cst_52 = arith.constant dense<0.000000e+00> : vector<16x384xf32>
    %160 = tpu.matmul %157, %159, %cst_52 {dimension_numbers = #tpu.dot_dimension_numbers<[1], [0], [0], [1], [0, 0, 1, 1], [], []>} : vector<16x128xbf16>, vector<128x384xbf16>, vector<16x384xf32> -> vector<16x384xf32>
    %161 = vector.extract_strided_slice %160 {offsets = [0, 128], sizes = [16, 128], strides = [1, 1]} : vector<16x384xf32> to vector<16x128xf32>
    %162 = vector.extract_strided_slice %160 {offsets = [0, 0], sizes = [16, 128], strides = [1, 1]} : vector<16x384xf32> to vector<16x128xf32>
    %c1_i32_53 = arith.constant 1 : i32
    %163 = tpu.dynamic_rotate %162 by %c1_i32_53 dim 0 : vector<16x128xf32>, i32 -> vector<16x128xf32>
    %cst_54 = arith.constant 0.000000e+00 : f32
    %164 = vector.broadcast %cst_54 : f32 to vector<16x128xf32>
    %165 = arith.select %18, %164, %163 : vector<16x128xi1>, vector<16x128xf32>
    %166 = vector.extract_strided_slice %160 {offsets = [0, 256], sizes = [16, 128], strides = [1, 1]} : vector<16x384xf32> to vector<16x128xf32>
    %c15_i32_55 = arith.constant 15 : i32
    %167 = tpu.dynamic_rotate %166 by %c15_i32_55 dim 0 : vector<16x128xf32>, i32 -> vector<16x128xf32>
    %cst_56 = arith.constant 0.000000e+00 : f32
    %168 = vector.broadcast %cst_56 : f32 to vector<16x128xf32>
    %169 = arith.select %20, %168, %167 : vector<16x128xi1>, vector<16x128xf32>
    %170 = arith.addf %161, %165 : vector<16x128xf32>
    %171 = arith.addf %170, %169 : vector<16x128xf32>
    %172 = vector.shape_cast %171 : vector<16x128xf32> to vector<1x16x128xf32>
    %173 = vector.extract_strided_slice %31 {offsets = [3, 0], sizes = [1, 128], strides = [1, 1]} : vector<4x128xf32> to vector<1x128xf32>
    %174 = vector.shape_cast %173 : vector<1x128xf32> to vector<128xf32>
    %175 = vector.shape_cast %174 : vector<128xf32> to vector<1x1x128xf32>
    %176 = vector.broadcast %175 : vector<1x1x128xf32> to vector<1x16x128xf32>
    %177 = arith.addf %172, %176 : vector<1x16x128xf32>
    %cst_57 = arith.constant 5.000000e-01 : f32
    %178 = vector.broadcast %cst_57 : f32 to vector<1x16x128xf32>
    %179 = arith.mulf %178, %177 : vector<1x16x128xf32>
    %cst_58 = arith.constant 4.471500e-02 : f32
    %180 = vector.broadcast %cst_58 : f32 to vector<1x16x128xf32>
    %181 = arith.mulf %180, %177 : vector<1x16x128xf32>
    %182 = arith.mulf %181, %177 : vector<1x16x128xf32>
    %183 = arith.mulf %182, %177 : vector<1x16x128xf32>
    %184 = arith.addf %177, %183 : vector<1x16x128xf32>
    %cst_59 = arith.constant 0.797884583 : f32
    %185 = vector.broadcast %cst_59 : f32 to vector<1x16x128xf32>
    %186 = arith.mulf %185, %184 : vector<1x16x128xf32>
    %187 = math.tanh %186 : vector<1x16x128xf32>
    %cst_60 = arith.constant 1.000000e+00 : f32
    %188 = vector.broadcast %cst_60 : f32 to vector<1x16x128xf32>
    %189 = arith.addf %188, %187 : vector<1x16x128xf32>
    %190 = arith.mulf %179, %189 : vector<1x16x128xf32>
    %191 = vector.extract_strided_slice %32 {offsets = [0, 3, 0], sizes = [1, 1, 128], strides = [1, 1, 1]} : vector<1x4x128xf32> to vector<1x1x128xf32>
    %192 = vector.shape_cast %191 : vector<1x1x128xf32> to vector<1x128xf32>
    %193 = vector.shape_cast %192 : vector<1x128xf32> to vector<1x1x128xf32>
    %194 = vector.broadcast %193 : vector<1x1x128xf32> to vector<1x16x128xf32>
    %195 = arith.addf %190, %194 : vector<1x16x128xf32>
    %196 = arith.addf %195, %115 : vector<1x16x128xf32>
    %cst_61 = arith.constant 0.707106769 : f32
    %197 = vector.broadcast %cst_61 : f32 to vector<1x16x128xf32>
    %198 = arith.mulf %196, %197 : vector<1x16x128xf32>
    %c0_62 = arith.constant 0 : index
    %c0_63 = arith.constant 0 : index
    %c0_64 = arith.constant 0 : index
    %199 = vector.load %arg7[%c0_62, %c0_63, %c0_64] : memref<1x16x128xf32, #tpu.memory_space<vmem>>, vector<1x16x128xf32>
    tpu.vector_store %arg7[%c0_62, %c0_63, %c0_64], %198 {strides = array<i32>} : memref<1x16x128xf32, #tpu.memory_space<vmem>>, vector<1x16x128xf32>,
    return
  }
  func.func @transform_0(%arg0: i32) -> (i32, i32, i32) {
    %c0_i32 = arith.constant 0 : i32
    %c0_i32_0 = arith.constant 0 : i32
    %c0_i32_1 = arith.constant 0 : i32
    return %arg0, %c0_i32, %c0_i32_0 : i32, i32, i32
  }
  func.func @transform_1(%arg0: i32) -> (i32, i32) {
    %c0_i32 = arith.constant 0 : i32
    %c0_i32_0 = arith.constant 0 : i32
    %c0_i32_1 = arith.constant 0 : i32
    return %c0_i32, %c0_i32_0 : i32, i32
  }
  func.func @transform_2(%arg0: i32) -> (i32, i32) {
    %c0_i32 = arith.constant 0 : i32
    %c0_i32_0 = arith.constant 0 : i32
    %c0_i32_1 = arith.constant 0 : i32
    return %c0_i32, %c0_i32_0 : i32, i32
  }
  func.func @transform_3(%arg0: i32) -> (i32, i32, i32) {
    %c0_i32 = arith.constant 0 : i32
    %c0_i32_0 = arith.constant 0 : i32
    %c0_i32_1 = arith.constant 0 : i32
    %c0_i32_2 = arith.constant 0 : i32
    return %c0_i32, %c0_i32_0, %c0_i32_1 : i32, i32, i32
  }
  func.func @transform_4(%arg0: i32) -> (i32, i32) {
    %c0_i32 = arith.constant 0 : i32
    %c0_i32_0 = arith.constant 0 : i32
    %c0_i32_1 = arith.constant 0 : i32
    return %c0_i32, %c0_i32_0 : i32, i32
  }
  func.func @transform_5(%arg0: i32) -> (i32, i32, i32) {
    %c0_i32 = arith.constant 0 : i32
    %c0_i32_0 = arith.constant 0 : i32
    %c0_i32_1 = arith.constant 0 : i32
    return %arg0, %c0_i32, %c0_i32_0 : i32, i32, i32
  }
  func.func @transform_6(%arg0: i32) -> (i32, i32, i32) {
    %c0_i32 = arith.constant 0 : i32
    %c0_i32_0 = arith.constant 0 : i32
    %c0_i32_1 = arith.constant 0 : i32
    return %arg0, %c0_i32, %c0_i32_0 : i32, i32, i32
  }
}

</mosaic_0001>

<llo_original>
// kernel: tpu_custom_call.1
$region0: #{tpu_custom_call.1}
  #allocation0 [shape = 'u32[]', space=smem, size = 0x4, offset = 0x4, fixed_abs, tag = 'smem constant byte address 0x4 - core index']
  #allocation1 [shape = 'u32[144,128]{1,0:T(1,128)}', space=vmem, size = 0x12000, scoped, tag = 'internal scratch']
  %s0 = inlined_call_operand.hbm [shape: f32[2,8,128], index: 0, kind: input, shape index: {}]
  %s1 = inlined_call_operand.hbm [shape: bf16[128,256], index: 1, kind: input, shape index: {}]
  %s2 = inlined_call_operand.vmem [shape: f32[1,128], index: 2, kind: input, shape index: {}]
  %s3 = inlined_call_operand.hbm [shape: bf16[4,128,384], index: 3, kind: input, shape index: {}]
  %s4 = inlined_call_operand.hbm [shape: f32[4,128], index: 4, kind: input, shape index: {}]
  %s5 = inlined_call_operand.vmem [shape: f32[2,4,128], index: 5, kind: input, shape index: {}]
  %s6 = inlined_call_operand.hbm [shape: f32[2,16,128], index: 6, kind: output, shape index: {}]
  %s7 = sld [smem:[#allocation0]]
  $region73: #{tpu_custom_call.1} parent=0
    _
  %s9 = ssub.s32 1, %s7
  %s10 = scalar_select 0, %s9, %s7
  $region1: #{tpu_custom_call.1} parent=0
    #allocation2 [shape = 'u8[8192]{0}', space=vmem, size = 0x2000, scoped, tag = 'input window, operand 0']
    #allocation3 [shape = 's32[2]{0}', space=sflag, size = 0x8, scoped, tag = 'scoped memory for tpu_custom_call.1']
    #allocation4 [shape = 's32[2]{0}', space=sflag, size = 0x8, scoped, tag = 'scoped memory for tpu_custom_call.1']
    #allocation5 [shape = 'u8[65536]{0}', space=vmem, size = 0x10000, scoped, tag = 'input window, operand 1, single buffered']
    #allocation6 [shape = 's32[1]{0}', space=sflag, size = 0x4, scoped, tag = 'scoped memory for tpu_custom_call.1']
    #allocation7 [shape = 'u8[393216]{0}', space=vmem, size = 0x60000, scoped, tag = 'input window, operand 3, single buffered']
    #allocation8 [shape = 'u8[2048]{0}', space=vmem, size = 0x800, scoped, tag = 'input window, operand 4, single buffered']
    #allocation9 [shape = 's32[1]{0}', space=sflag, size = 0x4, scoped, tag = 'scoped memory for tpu_custom_call.1']
    #allocation10 [shape = 'u8[16384]{0}', space=vmem, size = 0x4000, scoped, tag = 'output window, operand 0']
    %11 = vsyncpa [#allocation3], 0
    %s12 = scalar_lea.sflag [#allocation3], 1
    %13 = vsyncpa %s12, 0
    %14 = vsyncpa [#allocation6], 0
    %15 = vsyncpa [#allocation9], 0
    %16 = vsyncpa [#allocation4], 0
    %s17 = scalar_lea.sflag [#allocation4], 1
    %18 = vsyncpa %s17, 0
    loop: start=0, step=1, limit=4
    $region2: #{tpu_custom_call.1} parent=1 // loop_pre_header
      _
    $region3: #{tpu_custom_call.1} parent=1 // loop_header
      %s20 = sphi 0, %s24
      %p21 = scmp.ge.s32.totalorder %s20, 4
      %s30 = sphi 0, %s32
      %s33 = sphi 0, %s30
      %s34 = sphi 0, %s33
      %s50 = sphi 0, %s34
      %s54 = sphi 0, %s54
      %s56 = sphi 0, %s54
      %s57 = sphi 0, %s56
      %s71 = sphi 0, %s57
      %s75 = sphi 0, %s75
      %s77 = sphi 0, %s75
      %s78 = sphi 0, %s77
      %s92 = sphi 0, %s78
      %s96 = sphi 0, %s96
      %s98 = sphi 0, %s96
      %s99 = sphi 0, %s98
      %s113 = sphi 0, %s99
      %s117 = sphi 0, %s117
      %s119 = sphi 0, %s117
      %s120 = sphi 0, %s119
      %s134 = sphi 0, %s120
      %s140 = sphi 0, %s142
      %s143 = sphi 0, %s140
      %s144 = sphi 0, %s143
      %s160 = sphi 0, %s144
      %s166 = sphi 0, %s168
      %s169 = sphi 0, %s166
      %s170 = sphi 0, %s169
      %s186 = sphi 0, %s170
    $region4: #{tpu_custom_call.1} parent=1 // loop_header_branch
      %23 = sbr.rel (%p21) target = $region8
    $region5: #{tpu_custom_call.1} parent=1 // loop_body
      %s25 = ssub.s32 %s20, 1
      %s26 = ssub.s32 %s20, 2
      %s27 = sadd.s32 %s20, 1
      %s28 = ssub.s32 %s20, %s27
      %p29 = scmp.eq.s32.totalorder %s28, 0
      %s31 = sadd.s32 %s30, 1
      %s32 = scalar_select %p29, %s30, %s31
      %p35 = pneg %p29
      %p36 = scmp.eq.s32.totalorder %s20, 1
      %p37 = por %p35, %p36
      %p38 = scmp.ne.s32.totalorder %s30, %s33
      %p39 = scmp.eq.s32.totalorder %s20, 0
      %p40 = por %p38, %p39
      %p41 = scmp.ne.s32.totalorder %s30, %s33
      %p42 = scmp.eq.s32.totalorder %s25, 1
      %p43 = por %p41, %p42
      %p44 = scmp.ne.s32.totalorder %s33, %s34
      %p45 = scmp.eq.s32.totalorder %s25, 0
      %p46 = por %p44, %p45
      %p47 = scmp.ne.s32.totalorder %s33, %s34
      %p48 = scmp.eq.s32.totalorder %s26, 1
      %p49 = por %p47, %p48
      %p51 = scmp.ne.s32.totalorder %s34, %s50
      %p52 = scmp.eq.s32.totalorder %s26, 0
      %p53 = por %p51, %p52
      %s55 = sadd.s32 %s54, 1
      %p58 = scmp.eq.s32.totalorder %s20, 1
      %p59 = scmp.ne.s32.totalorder %s54, %s56
      %p60 = scmp.eq.s32.totalorder %s20, 0
      %p61 = por %p59, %p60
      %p62 = scmp.ne.s32.totalorder %s54, %s56
      %p63 = scmp.eq.s32.totalorder %s25, 1
      %p64 = por %p62, %p63
      %p65 = scmp.ne.s32.totalorder %s56, %s57
      %p66 = scmp.eq.s32.totalorder %s25, 0
      %p67 = por %p65, %p66
      %p68 = scmp.ne.s32.totalorder %s56, %s57
      %p69 = scmp.eq.s32.totalorder %s26, 1
      %p70 = por %p68, %p69
      %p72 = scmp.ne.s32.totalorder %s57, %s71
      %p73 = scmp.eq.s32.totalorder %s26, 0
      %p74 = por %p72, %p73
      %s76 = sadd.s32 %s75, 1
      %p79 = scmp.eq.s32.totalorder %s20, 1
      %p80 = scmp.ne.s32.totalorder %s75, %s77
      %p81 = scmp.eq.s32.totalorder %s20, 0
      %p82 = por %p80, %p81
      %p83 = scmp.ne.s32.totalorder %s75, %s77
      %p84 = scmp.eq.s32.totalorder %s25, 1
      %p85 = por %p83, %p84
      %p86 = scmp.ne.s32.totalorder %s77, %s78
      %p87 = scmp.eq.s32.totalorder %s25, 0
      %p88 = por %p86, %p87
      %p89 = scmp.ne.s32.totalorder %s77, %s78
      %p90 = scmp.eq.s32.totalorder %s26, 1
      %p91 = por %p89, %p90
      %p93 = scmp.ne.s32.totalorder %s78, %s92
      %p94 = scmp.eq.s32.totalorder %s26, 0
      %p95 = por %p93, %p94
      %s97 = sadd.s32 %s96, 1
      %p100 = scmp.eq.s32.totalorder %s20, 1
      %p101 = scmp.ne.s32.totalorder %s96, %s98
      %p102 = scmp.eq.s32.totalorder %s20, 0
      %p103 = por %p101, %p102
      %p104 = scmp.ne.s32.totalorder %s96, %s98
      %p105 = scmp.eq.s32.totalorder %s25, 1
      %p106 = por %p104, %p105
      %p107 = scmp.ne.s32.totalorder %s98, %s99
      %p108 = scmp.eq.s32.totalorder %s25, 0
      %p109 = por %p107, %p108
      %p110 = scmp.ne.s32.totalorder %s98, %s99
      %p111 = scmp.eq.s32.totalorder %s26, 1
      %p112 = por %p110, %p111
      %p114 = scmp.ne.s32.totalorder %s99, %s113
      %p115 = scmp.eq.s32.totalorder %s26, 0
      %p116 = por %p114, %p115
      %s118 = sadd.s32 %s117, 1
      %p121 = scmp.eq.s32.totalorder %s20, 1
      %p122 = scmp.ne.s32.totalorder %s117, %s119
      %p123 = scmp.eq.s32.totalorder %s20, 0
      %p124 = por %p122, %p123
      %p125 = scmp.ne.s32.totalorder %s117, %s119
      %p126 = scmp.eq.s32.totalorder %s25, 1
      %p127 = por %p125, %p126
      %p128 = scmp.ne.s32.totalorder %s119, %s120
      %p129 = scmp.eq.s32.totalorder %s25, 0
      %p130 = por %p128, %p129
      %p131 = scmp.ne.s32.totalorder %s119, %s120
      %p132 = scmp.eq.s32.totalorder %s26, 1
      %p133 = por %p131, %p132
      %p135 = scmp.ne.s32.totalorder %s120, %s134
      %p136 = scmp.eq.s32.totalorder %s26, 0
      %p137 = por %p135, %p136
      %s138 = ssub.s32 %s20, %s27
      %p139 = scmp.eq.s32.totalorder %s138, 0
      %s141 = sadd.s32 %s140, 1
      %s142 = scalar_select %p139, %s140, %s141
      %p145 = pneg %p139
      %p146 = scmp.eq.s32.totalorder %s20, 1
      %p147 = por %p145, %p146
      %p148 = scmp.ne.s32.totalorder %s140, %s143
      %p149 = scmp.eq.s32.totalorder %s20, 0
      %p150 = por %p148, %p149
      %p151 = scmp.ne.s32.totalorder %s140, %s143
      %p152 = scmp.eq.s32.totalorder %s25, 1
      %p153 = por %p151, %p152
      %p154 = scmp.ne.s32.totalorder %s143, %s144
      %p155 = scmp.eq.s32.totalorder %s25, 0
      %p156 = por %p154, %p155
      %p157 = scmp.ne.s32.totalorder %s143, %s144
      %p158 = scmp.eq.s32.totalorder %s26, 1
      %p159 = por %p157, %p158
      %p161 = scmp.ne.s32.totalorder %s144, %s160
      %p162 = scmp.eq.s32.totalorder %s26, 0
      %p163 = por %p161, %p162
      %s164 = ssub.s32 %s20, %s27
      %p165 = scmp.eq.s32.totalorder %s164, 0
      %s167 = sadd.s32 %s166, 1
      %s168 = scalar_select %p165, %s166, %s167
      %p171 = pneg %p165
      %p172 = scmp.eq.s32.totalorder %s20, 1
      %p173 = por %p171, %p172
      %p174 = scmp.ne.s32.totalorder %s166, %s169
      %p175 = scmp.eq.s32.totalorder %s20, 0
      %p176 = por %p174, %p175
      %p177 = scmp.ne.s32.totalorder %s166, %s169
      %p178 = scmp.eq.s32.totalorder %s25, 1
      %p179 = por %p177, %p178
      %p180 = scmp.ne.s32.totalorder %s169, %s170
      %p181 = scmp.eq.s32.totalorder %s25, 0
      %p182 = por %p180, %p181
      %p183 = scmp.ne.s32.totalorder %s169, %s170
      %p184 = scmp.eq.s32.totalorder %s26, 1
      %p185 = por %p183, %p184
      %p187 = scmp.ne.s32.totalorder %s170, %s186
      %p188 = scmp.eq.s32.totalorder %s26, 0
      %p189 = por %p187, %p188
      %p190 = scmp.le.s32.totalorder 1, %s20
      %p191 = scmp.lt.s32.totalorder %s20, 3
      %p192 = pnand %p190, %p191
      %p193 = pneg %p192
      // Predicated region
      $region9: #{tpu_custom_call.1} parent=5 // pred_check
        _
      $region10: #{tpu_custom_call.1} parent=5 // pred_check_branch
        %195 = sbr.rel (%p192) target = $region12
      $region11: #{tpu_custom_call.1} parent=5 // pred_region
        %s196 = ssub.s32 %s20, 1
        // Predicated region
        $region13: #{tpu_custom_call.1} parent=11 // pred_check
          %p197 = pneg %p67
        $region14: #{tpu_custom_call.1} parent=11 // pred_check_branch
          %199 = sbr.rel (%p197) target = $region16
        $region15: #{tpu_custom_call.1} parent=11 // pred_region
          %s201 = ssub.s32 2048, 2048
          %202 = vsyncadd [#allocation6], %s201
          %s203 = sshll.u32 [#allocation5], 4
          %s204 = int_to_ptr.vmem [resolvable:$true] %s203
          %209 = dma.hbm_to_vmem [thread:$0]  %s1, 2048, %s204, [#allocation6], 128, 128, 8
        $region16: #{tpu_custom_call.1} parent=11 // pred_fallthru
          _
        // Predicated region
        $region17: #{tpu_custom_call.1} parent=11 // pred_check
          %p210 = pneg %p88
        $region18: #{tpu_custom_call.1} parent=11 // pred_check_branch
          %212 = sbr.rel (%p210) target = $region20
        $region19: #{tpu_custom_call.1} parent=11 // pred_region
          _
        $region20: #{tpu_custom_call.1} parent=11 // pred_fallthru
          _
        // Predicated region
        $region21: #{tpu_custom_call.1} parent=11 // pred_check
          %p213 = pneg %p109
        $region22: #{tpu_custom_call.1} parent=11 // pred_check_branch
          %215 = sbr.rel (%p213) target = $region24
        $region23: #{tpu_custom_call.1} parent=11 // pred_region
          %s217 = ssub.s32 12288, 12288
          %218 = vsyncadd [#allocation6], %s217
          %s219 = sshll.u32 [#allocation7], 4
          %s220 = int_to_ptr.vmem [resolvable:$true] %s219
          %225 = dma.hbm_to_vmem [thread:$0]  %s3, 12288, %s220, [#allocation6], 192, 192, 12
        $region24: #{tpu_custom_call.1} parent=11 // pred_fallthru
          _
        // Predicated region
        $region25: #{tpu_custom_call.1} parent=11 // pred_check
          %p226 = pneg %p130
        $region26: #{tpu_custom_call.1} parent=11 // pred_check_branch
          %228 = sbr.rel (%p226) target = $region28
        $region27: #{tpu_custom_call.1} parent=11 // pred_region
          %s230 = ssub.s32 64, 64
          %231 = vsyncadd [#allocation9], %s230
          %s233 = sshll.u32 [#allocation8], 4
          %s234 = int_to_ptr.vmem [resolvable:$true] %s233
          %236 = dma.hbm_to_vmem [thread:$0]  %s4, 64, %s234, [#allocation9]
        $region28: #{tpu_custom_call.1} parent=11 // pred_fallthru
          _
      $region12: #{tpu_custom_call.1} parent=5 // pred_fallthru
        _
      %p237 = scmp.lt.s32.totalorder %s20, 2
      // Predicated region
      $region29: #{tpu_custom_call.1} parent=5 // pred_check
        %p238 = pneg %p237
      $region30: #{tpu_custom_call.1} parent=5 // pred_check_branch
        %240 = sbr.rel (%p238) target = $region32
      $region31: #{tpu_custom_call.1} parent=5 // pred_region
        // Predicated region
        $region33: #{tpu_custom_call.1} parent=31 // pred_check
          %p241 = pneg %p40
        $region34: #{tpu_custom_call.1} parent=31 // pred_check_branch
          %243 = sbr.rel (%p241) target = $region36
        $region35: #{tpu_custom_call.1} parent=31 // pred_region
          %s244 = sand.u32 %s30, 1
          %s245 = scalar_lea.sflag [#allocation3], %s244
          %s246 = sand.u32 %s30, 1
          %s247 = smul.addr %s246, 8
          %s248 = scalar_lea.vmem [#allocation2], %s247
          %s250 = ssub.s32 128, 128
          %251 = vsyncadd %s245, %s250
          %s252 = smul.addr %s20, 128
          %s253 = scalar_lea.hbm %s0, %s252
          %s255 = sshll.u32 %s248, 4
          %s256 = int_to_ptr.vmem [resolvable:$true] %s255
          %258 = dma.hbm_to_vmem [thread:$0]  %s253, 128, %s256, %s245
        $region36: #{tpu_custom_call.1} parent=31 // pred_fallthru
          _
        // Predicated region
        $region37: #{tpu_custom_call.1} parent=31 // pred_check
          %p259 = pneg %p150
        $region38: #{tpu_custom_call.1} parent=31 // pred_check_branch
          %261 = sbr.rel (%p259) target = $region40
        $region39: #{tpu_custom_call.1} parent=31 // pred_region
          %p262 = scmp.lt.s32.totalorder %s20, 1
          %s263 = scalar_select %p262, %s20, 1
          %s264 = smul.addr %s263, 4
          %s265 = scalar_lea.vmem %s5, %s264
        $region40: #{tpu_custom_call.1} parent=31 // pred_fallthru
          _
      $region32: #{tpu_custom_call.1} parent=5 // pred_fallthru
        _
      %p266 = scmp.le.s32.totalorder 1, %s20
      %p267 = scmp.lt.s32.totalorder %s20, 3
      %p268 = pnand %p266, %p267
      %p269 = pneg %p268
      // Predicated region
      $region41: #{tpu_custom_call.1} parent=5 // pred_check
        _
      $region42: #{tpu_custom_call.1} parent=5 // pred_check_branch
        %271 = sbr.rel (%p268) target = $region44
      $region43: #{tpu_custom_call.1} parent=5 // pred_region
        %s272 = ssub.s32 %s20, 1
        %s273 = sand.u32 %s33, 1
        %s274 = scalar_lea.sflag [#allocation3], %s273
        %s275 = sand.u32 %s33, 1
        %s276 = smul.addr %s275, 8
        %s277 = scalar_lea.vmem [#allocation2], %s276
        // Predicated region
        $region45: #{tpu_custom_call.1} parent=43 // pred_check
          %p278 = pneg %p46
        $region46: #{tpu_custom_call.1} parent=43 // pred_check_branch
          %280 = sbr.rel (%p278) target = $region48
        $region47: #{tpu_custom_call.1} parent=43 // pred_region
          %281 = dma.done %s274, 128
        $region48: #{tpu_custom_call.1} parent=43 // pred_fallthru
          _
        // Predicated region
        $region49: #{tpu_custom_call.1} parent=43 // pred_check
          %p282 = pneg %p67
        $region50: #{tpu_custom_call.1} parent=43 // pred_check_branch
          %284 = sbr.rel (%p282) target = $region52
        $region51: #{tpu_custom_call.1} parent=43 // pred_region
          %285 = dma.done [#allocation6], 2048
        $region52: #{tpu_custom_call.1} parent=43 // pred_fallthru
          _
        // Predicated region
        $region53: #{tpu_custom_call.1} parent=43 // pred_check
          %p286 = pneg %p109
        $region54: #{tpu_custom_call.1} parent=43 // pred_check_branch
          %288 = sbr.rel (%p286) target = $region56
        $region55: #{tpu_custom_call.1} parent=43 // pred_region
          %289 = dma.done [#allocation6], 12288
        $region56: #{tpu_custom_call.1} parent=43 // pred_fallthru
          _
        // Predicated region
        $region57: #{tpu_custom_call.1} parent=43 // pred_check
          %p290 = pneg %p130
        $region58: #{tpu_custom_call.1} parent=43 // pred_check_branch
          %292 = sbr.rel (%p290) target = $region60
        $region59: #{tpu_custom_call.1} parent=43 // pred_region
          %293 = dma.done [#allocation9], 64
        $region60: #{tpu_custom_call.1} parent=43 // pred_fallthru
          _
        %s294 = sand.u32 %s33, 1
        %s295 = scalar_lea.sflag [#allocation3], %s294
        %s296 = sand.u32 %s33, 1
        %s297 = smul.addr %s296, 8
        %s298 = scalar_lea.vmem [#allocation2], %s297
        %p299 = pneg %p46
        %p300 = pneg %p43
        %p301 = pneg %p67
        %p302 = pneg %p64
        %p303 = pneg %p88
        %p304 = pneg %p85
        %p305 = pneg %p109
        %p306 = pneg %p106
        %p307 = pneg %p130
        %p308 = pneg %p127
        %p309 = scmp.lt.s32.totalorder %s25, 1
        %s310 = scalar_select %p309, %s25, 1
        %s311 = smul.addr %s310, 4
        %s312 = scalar_lea.vmem %s5, %s311
        %p313 = pneg %p156
        %p314 = pneg %p153
        %p315 = pneg %p182
        %p316 = pneg %p179
        %s317 = sand.u32 %s169, 1
        %s318 = scalar_lea.sflag [#allocation4], %s317
        %s319 = sand.u32 %s169, 1
        %s320 = smul.addr %s319, 16
        %s321 = scalar_lea.vmem [#allocation10], %s320
        %p322 = scmp.lt.s32.totalorder %s25, 1
        %s323 = scalar_select %p322, %s25, 1
        %s324 = smul.addr %s323, 4
        %s325 = scalar_lea.vmem %s5, %s324
        %v327 = vlaneseq
        %v328 = vshrl.u32 %v327, 7
        %v329 = vadd.s32 %v328, 8
        %vm330 = vcmp.lt.s32.totalorder %v328, 0
        %v331 = vsub.s32 0, %v328
        %v332 = vsel %vm330, %v331, %v328
        %v333 = vshrl.u32 %v332, 4
        %v334 = vand.u32 %v332, 15
        %v335 = vsub.s32 0, %v334
        %v336 = vsel %vm330, %v335, %v334
        %vm337 = vcmp.lt.s32.totalorder %v329, 0
        %v338 = vsub.s32 0, %v329
        %v339 = vsel %vm337, %v338, %v329
        %v340 = vshrl.u32 %v339, 4
        %v341 = vand.u32 %v339, 15
        %v342 = vsub.s32 0, %v341
        %v343 = vsel %vm337, %v342, %v341
        %vm344 = vcmp.ne.s32.totalorder %v336, 0
        %vm345 = vcmp.ne.s32.totalorder %v343, 0
        %vm346 = vcmp.lt.s32.totalorder %v336, 0
        %vm347 = vcmp.lt.s32.totalorder %v343, 0
        %vm348 = vmand %vm346, %vm344
        %vm349 = vmand %vm347, %vm345
        %v350 = vadd.s32 %v336, 16
        %v351 = vadd.s32 %v343, 16
        %v352 = vsel %vm348, %v350, %v336
        %v353 = vsel %vm349, %v351, %v343
        %vm354 = vcmp.eq.s32.totalorder %v352, 0
        %vm355 = vcmp.eq.s32.totalorder %v353, 0
        %vm356 = vcmp.eq.s32.totalorder %v352, 15
        %vm357 = vcmp.eq.s32.totalorder %v353, 15
        %v358 = vld [vmem:[%s277] sm:$0xff]
        %v359 = vpack.c.bf16 %v358, %v358
        %v360 = vld [vmem:[#allocation5] sm:$0xff]
        %v361 = vld [vmem:[#allocation5 + $0x8] sm:$0xff]
        %v362 = vld [vmem:[#allocation5 + $0x10] sm:$0xff]
        %v363 = vld [vmem:[#allocation5 + $0x18] sm:$0xff]
        %v364 = vld [vmem:[#allocation5 + $0x20] sm:$0xff]
        %v365 = vld [vmem:[#allocation5 + $0x28] sm:$0xff]
        %v366 = vld [vmem:[#allocation5 + $0x30] sm:$0xff]
        %v367 = vld [vmem:[#allocation5 + $0x38] sm:$0xff]
        %v368 = vld [vmem:[#allocation5 + $0x40] sm:$0xff]
        %v369 = vld [vmem:[#allocation5 + $0x48] sm:$0xff]
        %v370 = vld [vmem:[#allocation5 + $0x50] sm:$0xff]
        %v371 = vld [vmem:[#allocation5 + $0x58] sm:$0xff]
        %v372 = vld [vmem:[#allocation5 + $0x60] sm:$0xff]
        %v373 = vld [vmem:[#allocation5 + $0x68] sm:$0xff]
        %v374 = vld [vmem:[#allocation5 + $0x70] sm:$0xff]
        %v375 = vld [vmem:[#allocation5 + $0x78] sm:$0xff]
        %v392 = vunpack.c.l.b16 %v360
        %v393 = vunpack.c.h.b16 %v360
        %v394 = vunpack.c.l.b16 %v361
        %v395 = vunpack.c.h.b16 %v361
        %v396 = vunpack.c.l.b16 %v362
        %v397 = vunpack.c.h.b16 %v362
        %v398 = vunpack.c.l.b16 %v363
        %v399 = vunpack.c.h.b16 %v363
        %v400 = vunpack.c.l.b16 %v364
        %v401 = vunpack.c.h.b16 %v364
        %v402 = vunpack.c.l.b16 %v365
        %v403 = vunpack.c.h.b16 %v365
        %v404 = vunpack.c.l.b16 %v366
        %v405 = vunpack.c.h.b16 %v366
        %v406 = vunpack.c.l.b16 %v367
        %v407 = vunpack.c.h.b16 %v367
        %v408 = vunpack.c.l.b16 %v368
        %v409 = vunpack.c.h.b16 %v368
        %v410 = vunpack.c.l.b16 %v369
        %v411 = vunpack.c.h.b16 %v369
        %v412 = vunpack.c.l.b16 %v370
        %v413 = vunpack.c.h.b16 %v370
        %v414 = vunpack.c.l.b16 %v371
        %v415 = vunpack.c.h.b16 %v371
        %v416 = vunpack.c.l.b16 %v372
        %v417 = vunpack.c.h.b16 %v372
        %v418 = vunpack.c.l.b16 %v373
        %v419 = vunpack.c.h.b16 %v373
        %v420 = vunpack.c.l.b16 %v374
        %v421 = vunpack.c.h.b16 %v374
        %v422 = vunpack.c.l.b16 %v375
        %v423 = vunpack.c.h.b16 %v375
        %v424 = vpack.c.b16 %v394, %v392
        %v425 = vpack.c.b16 %v395, %v393
        %v426 = vpack.c.b16 %v398, %v396
        %v427 = vpack.c.b16 %v399, %v397
        %v428 = vpack.c.b16 %v402, %v400
        %v429 = vpack.c.b16 %v403, %v401
        %v430 = vpack.c.b16 %v406, %v404
        %v431 = vpack.c.b16 %v407, %v405
        %v432 = vpack.c.b16 %v410, %v408
        %v433 = vpack.c.b16 %v411, %v409
        %v434 = vpack.c.b16 %v414, %v412
        %v435 = vpack.c.b16 %v415, %v413
        %v436 = vpack.c.b16 %v418, %v416
        %v437 = vpack.c.b16 %v419, %v417
        %v438 = vpack.c.b16 %v422, %v420
        %v439 = vpack.c.b16 %v423, %v421
        %456 = vmatprep.subr.bf16.mxu0 %v439
        %457 = vmatpush1.bf16.msra.mxu0 %v438
        %458 = vmatprep.subr.bf16.mxu0 %v437
        %459 = vmatpush1.bf16.msra.mxu0 %v436
        %460 = vmatprep.subr.bf16.mxu0 %v435
        %461 = vmatpush1.bf16.msra.mxu0 %v434
        %462 = vmatprep.subr.bf16.mxu0 %v433
        %463 = vmatpush1.bf16.msra.mxu0 %v432
        %464 = vmatprep.subr.bf16.mxu0 %v431
        %465 = vmatpush1.bf16.msra.mxu0 %v430
        %466 = vmatprep.subr.bf16.mxu0 %v429
        %467 = vmatpush1.bf16.msra.mxu0 %v428
        %468 = vmatprep.subr.bf16.mxu0 %v427
        %469 = vmatpush1.bf16.msra.mxu0 %v426
        %470 = vmatprep.subr.bf16.mxu0 %v425
        %471 = vmatpush1.bf16.msra.mxu0 %v424
        %472 = vmatprep.subr.bf16.mxu0 0
        %473 = vmatpush2.bf16.msra.mxu0 0
        %474 = vmatprep.subr.bf16.mxu0 0
        %475 = vmatpush2.bf16.msra.mxu0 0
        %476 = vmatprep.subr.bf16.mxu0 0
        %477 = vmatpush2.bf16.msra.mxu0 0
        %478 = vmatprep.subr.bf16.mxu0 0
        %479 = vmatpush2.bf16.msra.mxu0 0
        %480 = vmatprep.subr.bf16.mxu0 0
        %481 = vmatpush2.bf16.msra.mxu0 0
        %482 = vmatprep.subr.bf16.mxu0 0
        %483 = vmatpush2.bf16.msra.mxu0 0
        %484 = vmatprep.subr.bf16.mxu0 0
        %485 = vmatpush2.bf16.msra.mxu0 0
        %486 = vmatprep.subr.bf16.mxu0 0
        %487 = vmatpush2.bf16.msra.mxu0 0
        %488 = vmatprep.mubr.bf16.mxu0 0
        %489 = vmatmul.mubr.bf16.gmra.mxu0 %v359
        %v490 = vpop.f32.mrf.mxu0
        %v491 = vadd.f32 0.0, %v490
        %v492 = vpop.f32.mrf.mxu0
        %v493 = vadd.f32 0.0, %v492
        %v494 = vpop.f32.mrf.mxu0
        %v495 = vpop.f32.mrf.mxu0
        %496 = vdwg.mxu0
        %v499 = vcombine.low %v491, %v493
        %v500 = vcombine.high %v491, %v493
        %v504 = vunpack.c.l.s4 1935823168
        %v505 = vunpack.c.0.s8 %v504
        %v506 = vlaneseq
        %v507 = vshrl.u32 %v506, 7
        %v508 = vsub.s32 %v505, %v507
        %v509 = vrot.slane %v499, %v508
        %v511 = vunpack.c.l.s4 1935823168
        %v512 = vunpack.c.0.s8 %v511
        %v513 = vlaneseq
        %v514 = vshrl.u32 %v513, 7
        %v515 = vsub.s32 %v512, %v514
        %v516 = vrot.slane %v500, %v515
        %v517 = vld [vmem:[%s2] sm:$0x1]
        %v519 = vlaneseq
        %v520 = vshrl.u32 %v519, 7
        %v521 = vsub.s32 0, %v520
        %v522 = vrot.slane %v517, %v521
        %v524 = vadd.f32 %v509, %v522
        %v525 = vadd.f32 %v516, %v522
        %v526 = vld [vmem:[#allocation8] sm:$0xf]
        %v527 = vld [vmem:[%s325] sm:$0xf]
        %v528 = vpack.c.bf16 %v525, %v524
        %v529 = vld [vmem:[#allocation7] sm:$0xff]
        %v530 = vld [vmem:[#allocation7 + $0x8] sm:$0xf]
        %v531 = vld [vmem:[#allocation7 + $0xc] sm:$0xff]
        %v532 = vld [vmem:[#allocation7 + $0x14] sm:$0xf]
        %v533 = vld [vmem:[#allocation7 + $0x18] sm:$0xff]
        %v534 = vld [vmem:[#allocation7 + $0x20] sm:$0xf]
        %v535 = vld [vmem:[#allocation7 + $0x24] sm:$0xff]
        %v536 = vld [vmem:[#allocation7 + $0x2c] sm:$0xf]
        %v537 = vld [vmem:[#allocation7 + $0x30] sm:$0xff]
        %v538 = vld [vmem:[#allocation7 + $0x38] sm:$0xf]
        %v539 = vld [vmem:[#allocation7 + $0x3c] sm:$0xff]
        %v540 = vld [vmem:[#allocation7 + $0x44] sm:$0xf]
        %v541 = vld [vmem:[#allocation7 + $0x48] sm:$0xff]
        %v542 = vld [vmem:[#allocation7 + $0x50] sm:$0xf]
        %v543 = vld [vmem:[#allocation7 + $0x54] sm:$0xff]
        %v544 = vld [vmem:[#allocation7 + $0x5c] sm:$0xf]
        %v545 = vld [vmem:[#allocation7 + $0x60] sm:$0xff]
        %v546 = vld [vmem:[#allocation7 + $0x68] sm:$0xf]
        %v547 = vld [vmem:[#allocation7 + $0x6c] sm:$0xff]
        %v548 = vld [vmem:[#allocation7 + $0x74] sm:$0xf]
        %v549 = vld [vmem:[#allocation7 + $0x78] sm:$0xff]
        %v550 = vld [vmem:[#allocation7 + $0x80] sm:$0xf]
        %v551 = vld [vmem:[#allocation7 + $0x84] sm:$0xff]
        %v552 = vld [vmem:[#allocation7 + $0x8c] sm:$0xf]
        %v553 = vld [vmem:[#allocation7 + $0x90] sm:$0xff]
        %v554 = vld [vmem:[#allocation7 + $0x98] sm:$0xf]
        %v555 = vld [vmem:[#allocation7 + $0x9c] sm:$0xff]
        %v556 = vld [vmem:[#allocation7 + $0xa4] sm:$0xf]
        %v557 = vld [vmem:[#allocation7 + $0xa8] sm:$0xff]
        %v558 = vld [vmem:[#allocation7 + $0xb0] sm:$0xf]
        %v559 = vld [vmem:[#allocation7 + $0xb4] sm:$0xff]
        %v560 = vld [vmem:[#allocation7 + $0xbc] sm:$0xf]
        %v593 = vunpack.c.l.b16 %v529
        %v594 = vunpack.c.h.b16 %v529
        %v595 = vunpack.c.l.b16 %v530
        %v596 = vunpack.c.l.b16 %v531
        %v597 = vunpack.c.h.b16 %v531
        %v598 = vunpack.c.l.b16 %v532
        %v599 = vunpack.c.l.b16 %v533
        %v600 = vunpack.c.h.b16 %v533
        %v601 = vunpack.c.l.b16 %v534
        %v602 = vunpack.c.l.b16 %v535
        %v603 = vunpack.c.h.b16 %v535
        %v604 = vunpack.c.l.b16 %v536
        %v605 = vunpack.c.l.b16 %v537
        %v606 = vunpack.c.h.b16 %v537
        %v607 = vunpack.c.l.b16 %v538
        %v608 = vunpack.c.l.b16 %v539
        %v609 = vunpack.c.h.b16 %v539
        %v610 = vunpack.c.l.b16 %v540
        %v611 = vunpack.c.l.b16 %v541
        %v612 = vunpack.c.h.b16 %v541
        %v613 = vunpack.c.l.b16 %v542
        %v614 = vunpack.c.l.b16 %v543
        %v615 = vunpack.c.h.b16 %v543
        %v616 = vunpack.c.l.b16 %v544
        %v617 = vunpack.c.l.b16 %v545
        %v618 = vunpack.c.h.b16 %v545
        %v619 = vunpack.c.l.b16 %v546
        %v620 = vunpack.c.l.b16 %v547
        %v621 = vunpack.c.h.b16 %v547
        %v622 = vunpack.c.l.b16 %v548
        %v623 = vunpack.c.l.b16 %v549
        %v624 = vunpack.c.h.b16 %v549
        %v625 = vunpack.c.l.b16 %v550
        %v626 = vunpack.c.l.b16 %v551
        %v627 = vunpack.c.h.b16 %v551
        %v628 = vunpack.c.l.b16 %v552
        %v629 = vunpack.c.l.b16 %v553
        %v630 = vunpack.c.h.b16 %v553
        %v631 = vunpack.c.l.b16 %v554
        %v632 = vunpack.c.l.b16 %v555
        %v633 = vunpack.c.h.b16 %v555
        %v634 = vunpack.c.l.b16 %v556
        %v635 = vunpack.c.l.b16 %v557
        %v636 = vunpack.c.h.b16 %v557
        %v637 = vunpack.c.l.b16 %v558
        %v638 = vunpack.c.l.b16 %v559
        %v639 = vunpack.c.h.b16 %v559
        %v640 = vunpack.c.l.b16 %v560
        %v641 = vpack.c.b16 %v596, %v593
        %v642 = vpack.c.b16 %v597, %v594
        %v643 = vpack.c.b16 %v598, %v595
        %v644 = vpack.c.b16 %v602, %v599
        %v645 = vpack.c.b16 %v603, %v600
        %v646 = vpack.c.b16 %v604, %v601
        %v647 = vpack.c.b16 %v608, %v605
        %v648 = vpack.c.b16 %v609, %v606
        %v649 = vpack.c.b16 %v610, %v607
        %v650 = vpack.c.b16 %v614, %v611
        %v651 = vpack.c.b16 %v615, %v612
        %v652 = vpack.c.b16 %v616, %v613
        %v653 = vpack.c.b16 %v620, %v617
        %v654 = vpack.c.b16 %v621, %v618
        %v655 = vpack.c.b16 %v622, %v619
        %v656 = vpack.c.b16 %v626, %v623
        %v657 = vpack.c.b16 %v627, %v624
        %v658 = vpack.c.b16 %v628, %v625
        %v659 = vpack.c.b16 %v632, %v629
        %v660 = vpack.c.b16 %v633, %v630
        %v661 = vpack.c.b16 %v634, %v631
        %v662 = vpack.c.b16 %v638, %v635
        %v663 = vpack.c.b16 %v639, %v636
        %v664 = vpack.c.b16 %v640, %v637
        %689 = vmatprep.subr.bf16.mxu0 %v663
        %690 = vmatpush1.bf16.msra.mxu0 %v662
        %691 = vmatprep.subr.bf16.mxu0 %v660
        %692 = vmatpush1.bf16.msra.mxu0 %v659
        %693 = vmatprep.subr.bf16.mxu0 %v657
        %694 = vmatpush1.bf16.msra.mxu0 %v656
        %695 = vmatprep.subr.bf16.mxu0 %v654
        %696 = vmatpush1.bf16.msra.mxu0 %v653
        %697 = vmatprep.subr.bf16.mxu0 %v651
        %698 = vmatpush1.bf16.msra.mxu0 %v650
        %699 = vmatprep.subr.bf16.mxu0 %v648
        %700 = vmatpush1.bf16.msra.mxu0 %v647
        %701 = vmatprep.subr.bf16.mxu0 %v645
        %702 = vmatpush1.bf16.msra.mxu0 %v644
        %703 = vmatprep.subr.bf16.mxu0 %v642
        %704 = vmatpush1.bf16.msra.mxu0 %v641
        %705 = vmatprep.subr.bf16.mxu0 0
        %706 = vmatpush2.bf16.msra.mxu0 0
        %707 = vmatprep.subr.bf16.mxu0 0
        %708 = vmatpush2.bf16.msra.mxu0 0
        %709 = vmatprep.subr.bf16.mxu0 0
        %710 = vmatpush2.bf16.msra.mxu0 0
        %711 = vmatprep.subr.bf16.mxu0 0
        %712 = vmatpush2.bf16.msra.mxu0 0
        %713 = vmatprep.subr.bf16.mxu0 0
        %714 = vmatpush2.bf16.msra.mxu0 0
        %715 = vmatprep.subr.bf16.mxu0 0
        %716 = vmatpush2.bf16.msra.mxu0 0
        %717 = vmatprep.subr.bf16.mxu0 0
        %718 = vmatpush2.bf16.msra.mxu0 0
        %719 = vmatprep.subr.bf16.mxu0 0
        %720 = vmatpush2.bf16.msra.mxu0 0
        %721 = vmatprep.mubr.bf16.mxu0 0
        %722 = vmatmul.mubr.bf16.gmra.mxu0 %v528
        %v723 = vpop.f32.mrf.mxu0
        %v724 = vadd.f32 0.0, %v723
        %v725 = vpop.f32.mrf.mxu0
        %v726 = vadd.f32 0.0, %v725
        %v727 = vpop.f32.mrf.mxu0
        %v728 = vadd.f32 0.0, %v727
        %v729 = vpop.f32.mrf.mxu0
        %v730 = vadd.f32 0.0, %v729
        %731 = vdwg.mxu0
        %732 = vmatprep.subr.bf16.mxu0 0
        %733 = vmatpush1.bf16.msra.mxu0 %v664
        %734 = vmatprep.subr.bf16.mxu0 0
        %735 = vmatpush1.bf16.msra.mxu0 %v661
        %736 = vmatprep.subr.bf16.mxu0 0
        %737 = vmatpush1.bf16.msra.mxu0 %v658
        %738 = vmatprep.subr.bf16.mxu0 0
        %739 = vmatpush1.bf16.msra.mxu0 %v655
        %740 = vmatprep.subr.bf16.mxu0 0
        %741 = vmatpush1.bf16.msra.mxu0 %v652
        %742 = vmatprep.subr.bf16.mxu0 0
        %743 = vmatpush1.bf16.msra.mxu0 %v649
        %744 = vmatprep.subr.bf16.mxu0 0
        %745 = vmatpush1.bf16.msra.mxu0 %v646
        %746 = vmatprep.subr.bf16.mxu0 0
        %747 = vmatpush1.bf16.msra.mxu0 %v643
        %748 = vmatprep.subr.bf16.mxu0 0
        %749 = vmatpush2.bf16.msra.mxu0 0
        %750 = vmatprep.subr.bf16.mxu0 0
        %751 = vmatpush2.bf16.msra.mxu0 0
        %752 = vmatprep.subr.bf16.mxu0 0
        %753 = vmatpush2.bf16.msra.mxu0 0
        %754 = vmatprep.subr.bf16.mxu0 0
        %755 = vmatpush2.bf16.msra.mxu0 0
        %756 = vmatprep.subr.bf16.mxu0 0
        %757 = vmatpush2.bf16.msra.mxu0 0
        %758 = vmatprep.subr.bf16.mxu0 0
        %759 = vmatpush2.bf16.msra.mxu0 0
        %760 = vmatprep.subr.bf16.mxu0 0
        %761 = vmatpush2.bf16.msra.mxu0 0
        %762 = vmatprep.subr.bf16.mxu0 0
        %763 = vmatpush2.bf16.msra.mxu0 0
        %764 = vmatprep.mubr.bf16.mxu0 0
        %765 = vmatmul.mubr.bf16.gmra.mxu0 %v528
        %v766 = vpop.f32.mrf.mxu0
        %v767 = vadd.f32 0.0, %v766
        %v768 = vpop.f32.mrf.mxu0
        %v769 = vpop.f32.mrf.mxu0
        %v770 = vadd.f32 0.0, %v769
        %v771 = vpop.f32.mrf.mxu0
        %772 = vdwg.mxu0
        %v773 = vrot.slane %v724, 7
        %v774 = vrot.slane %v728, 7
        %vm775 = vcmp.lt.s32.totalorder %v328, 1
        %v776 = vsel %vm775, %v773, %v774
        %v777 = vsel %vm775, %v774, %v773
        %v778 = vsel %vm354, 0.0, %v777
        %v779 = vsel %vm355, 0.0, %v776
        %v780 = vrot.slane %v767, 1
        %v781 = vrot.slane %v770, 1
        %vm782 = vcmp.lt.s32.totalorder %v328, 7
        %v783 = vsel %vm782, %v780, %v781
        %v784 = vsel %vm782, %v781, %v780
        %v785 = vsel %vm356, 0.0, %v783
        %v786 = vsel %vm357, 0.0, %v784
        %v787 = vadd.f32 %v726, %v778
        %v788 = vadd.f32 %v730, %v779
        %v789 = vadd.f32 %v787, %v785
        %v790 = vadd.f32 %v788, %v786
        %v791 = vlaneseq
        %v792 = vshrl.u32 %v791, 7
        %v793 = vsub.s32 0, %v792
        %v794 = vrot.slane %v526, %v793
        %v795 = vadd.f32 %v789, %v794
        %v796 = vadd.f32 %v790, %v794
        %v797 = vmul.f32 %v795, 0.5
        %v798 = vmul.f32 %v796, 0.5
        %v799 = vmul.f32 %v795, 0.044715
        %v800 = vmul.f32 %v796, 0.044715
        %v801 = vmul.f32 %v799, %v795
        %v802 = vmul.f32 %v800, %v796
        %v803 = vmul.f32 %v801, %v795
        %v804 = vmul.f32 %v802, %v796
        %v805 = vadd.f32 %v795, %v803
        %v806 = vadd.f32 %v796, %v804
        %v807 = vmul.f32 %v805, 0.7978846
        %v808 = vmul.f32 %v806, 0.7978846
        %v809 = vtanh.pop %v807
        %v810 = vtanh.pop %v808
        %v811 = vadd.f32 %v809, 1.0
        %v812 = vadd.f32 %v810, 1.0
        %v813 = vmul.f32 %v797, %v811
        %v814 = vmul.f32 %v798, %v812
        %v815 = vlaneseq
        %v816 = vshrl.u32 %v815, 7
        %v817 = vsub.s32 0, %v816
        %v818 = vrot.slane %v527, %v817
        %v819 = vadd.f32 %v813, %v818
        %v820 = vadd.f32 %v814, %v818
        %v821 = vpack.c.bf16 %v820, %v819
        %s822 = scalar_lea.vmem [#allocation7], 192
        %v823 = vld [vmem:[%s822] sm:$0xff]
        %v824 = vld [vmem:[%s822 + $0x8] sm:$0xf]
        %v825 = vld [vmem:[%s822 + $0xc] sm:$0xff]
        %v826 = vld [vmem:[%s822 + $0x14] sm:$0xf]
        %v827 = vld [vmem:[%s822 + $0x18] sm:$0xff]
        %v828 = vld [vmem:[%s822 + $0x20] sm:$0xf]
        %v829 = vld [vmem:[%s822 + $0x24] sm:$0xff]
        %v830 = vld [vmem:[%s822 + $0x2c] sm:$0xf]
        %v831 = vld [vmem:[%s822 + $0x30] sm:$0xff]
        %v832 = vld [vmem:[%s822 + $0x38] sm:$0xf]
        %v833 = vld [vmem:[%s822 + $0x3c] sm:$0xff]
        %v834 = vld [vmem:[%s822 + $0x44] sm:$0xf]
        %v835 = vld [vmem:[%s822 + $0x48] sm:$0xff]
        %v836 = vld [vmem:[%s822 + $0x50] sm:$0xf]
        %v837 = vld [vmem:[%s822 + $0x54] sm:$0xff]
        %v838 = vld [vmem:[%s822 + $0x5c] sm:$0xf]
        %v839 = vld [vmem:[%s822 + $0x60] sm:$0xff]
        %v840 = vld [vmem:[%s822 + $0x68] sm:$0xf]
        %v841 = vld [vmem:[%s822 + $0x6c] sm:$0xff]
        %v842 = vld [vmem:[%s822 + $0x74] sm:$0xf]
        %v843 = vld [vmem:[%s822 + $0x78] sm:$0xff]
        %v844 = vld [vmem:[%s822 + $0x80] sm:$0xf]
        %v845 = vld [vmem:[%s822 + $0x84] sm:$0xff]
        %v846 = vld [vmem:[%s822 + $0x8c] sm:$0xf]
        %v847 = vld [vmem:[%s822 + $0x90] sm:$0xff]
        %v848 = vld [vmem:[%s822 + $0x98] sm:$0xf]
        %v849 = vld [vmem:[%s822 + $0x9c] sm:$0xff]
        %v850 = vld [vmem:[%s822 + $0xa4] sm:$0xf]
        %v851 = vld [vmem:[%s822 + $0xa8] sm:$0xff]
        %v852 = vld [vmem:[%s822 + $0xb0] sm:$0xf]
        %v853 = vld [vmem:[%s822 + $0xb4] sm:$0xff]
        %v854 = vld [vmem:[%s822 + $0xbc] sm:$0xf]
        %v887 = vunpack.c.l.b16 %v823
        %v888 = vunpack.c.h.b16 %v823
        %v889 = vunpack.c.l.b16 %v824
        %v890 = vunpack.c.l.b16 %v825
        %v891 = vunpack.c.h.b16 %v825
        %v892 = vunpack.c.l.b16 %v826
        %v893 = vunpack.c.l.b16 %v827
        %v894 = vunpack.c.h.b16 %v827
        %v895 = vunpack.c.l.b16 %v828
        %v896 = vunpack.c.l.b16 %v829
        %v897 = vunpack.c.h.b16 %v829
        %v898 = vunpack.c.l.b16 %v830
        %v899 = vunpack.c.l.b16 %v831
        %v900 = vunpack.c.h.b16 %v831
        %v901 = vunpack.c.l.b16 %v832
        %v902 = vunpack.c.l.b16 %v833
        %v903 = vunpack.c.h.b16 %v833
        %v904 = vunpack.c.l.b16 %v834
        %v905 = vunpack.c.l.b16 %v835
        %v906 = vunpack.c.h.b16 %v835
        %v907 = vunpack.c.l.b16 %v836
        %v908 = vunpack.c.l.b16 %v837
        %v909 = vunpack.c.h.b16 %v837
        %v910 = vunpack.c.l.b16 %v838
        %v911 = vunpack.c.l.b16 %v839
        %v912 = vunpack.c.h.b16 %v839
        %v913 = vunpack.c.l.b16 %v840
        %v914 = vunpack.c.l.b16 %v841
        %v915 = vunpack.c.h.b16 %v841
        %v916 = vunpack.c.l.b16 %v842
        %v917 = vunpack.c.l.b16 %v843
        %v918 = vunpack.c.h.b16 %v843
        %v919 = vunpack.c.l.b16 %v844
        %v920 = vunpack.c.l.b16 %v845
        %v921 = vunpack.c.h.b16 %v845
        %v922 = vunpack.c.l.b16 %v846
        %v923 = vunpack.c.l.b16 %v847
        %v924 = vunpack.c.h.b16 %v847
        %v925 = vunpack.c.l.b16 %v848
        %v926 = vunpack.c.l.b16 %v849
        %v927 = vunpack.c.h.b16 %v849
        %v928 = vunpack.c.l.b16 %v850
        %v929 = vunpack.c.l.b16 %v851
        %v930 = vunpack.c.h.b16 %v851
        %v931 = vunpack.c.l.b16 %v852
        %v932 = vunpack.c.l.b16 %v853
        %v933 = vunpack.c.h.b16 %v853
        %v934 = vunpack.c.l.b16 %v854
        %v935 = vpack.c.b16 %v890, %v887
        %v936 = vpack.c.b16 %v891, %v888
        %v937 = vpack.c.b16 %v892, %v889
        %v938 = vpack.c.b16 %v896, %v893
        %v939 = vpack.c.b16 %v897, %v894
        %v940 = vpack.c.b16 %v898, %v895
        %v941 = vpack.c.b16 %v902, %v899
        %v942 = vpack.c.b16 %v903, %v900
        %v943 = vpack.c.b16 %v904, %v901
        %v944 = vpack.c.b16 %v908, %v905
        %v945 = vpack.c.b16 %v909, %v906
        %v946 = vpack.c.b16 %v910, %v907
        %v947 = vpack.c.b16 %v914, %v911
        %v948 = vpack.c.b16 %v915, %v912
        %v949 = vpack.c.b16 %v916, %v913
        %v950 = vpack.c.b16 %v920, %v917
        %v951 = vpack.c.b16 %v921, %v918
        %v952 = vpack.c.b16 %v922, %v919
        %v953 = vpack.c.b16 %v926, %v923
        %v954 = vpack.c.b16 %v927, %v924
        %v955 = vpack.c.b16 %v928, %v925
        %v956 = vpack.c.b16 %v932, %v929
        %v957 = vpack.c.b16 %v933, %v930
        %v958 = vpack.c.b16 %v934, %v931
        %983 = vmatprep.subr.bf16.mxu0 %v957
        %984 = vmatpush1.bf16.msra.mxu0 %v956
        %985 = vmatprep.subr.bf16.mxu0 %v954
        %986 = vmatpush1.bf16.msra.mxu0 %v953
        %987 = vmatprep.subr.bf16.mxu0 %v951
        %988 = vmatpush1.bf16.msra.mxu0 %v950
        %989 = vmatprep.subr.bf16.mxu0 %v948
        %990 = vmatpush1.bf16.msra.mxu0 %v947
        %991 = vmatprep.subr.bf16.mxu0 %v945
        %992 = vmatpush1.bf16.msra.mxu0 %v944
        %993 = vmatprep.subr.bf16.mxu0 %v942
        %994 = vmatpush1.bf16.msra.mxu0 %v941
        %995 = vmatprep.subr.bf16.mxu0 %v939
        %996 = vmatpush1.bf16.msra.mxu0 %v938
        %997 = vmatprep.subr.bf16.mxu0 %v936
        %998 = vmatpush1.bf16.msra.mxu0 %v935
        %999 = vmatprep.subr.bf16.mxu0 0
        %1000 = vmatpush2.bf16.msra.mxu0 0
        %1001 = vmatprep.subr.bf16.mxu0 0
        %1002 = vmatpush2.bf16.msra.mxu0 0
        %1003 = vmatprep.subr.bf16.mxu0 0
        %1004 = vmatpush2.bf16.msra.mxu0 0
        %1005 = vmatprep.subr.bf16.mxu0 0
        %1006 = vmatpush2.bf16.msra.mxu0 0
        %1007 = vmatprep.subr.bf16.mxu0 0
        %1008 = vmatpush2.bf16.msra.mxu0 0
        %1009 = vmatprep.subr.bf16.mxu0 0
        %1010 = vmatpush2.bf16.msra.mxu0 0
        %1011 = vmatprep.subr.bf16.mxu0 0
        %1012 = vmatpush2.bf16.msra.mxu0 0
        %1013 = vmatprep.subr.bf16.mxu0 0
        %1014 = vmatpush2.bf16.msra.mxu0 0
        %1015 = vmatprep.mubr.bf16.mxu0 0
        %1016 = vmatmul.mubr.bf16.gmra.mxu0 %v821
        %v1017 = vpop.f32.mrf.mxu0
        %v1018 = vadd.f32 0.0, %v1017
        %v1019 = vpop.f32.mrf.mxu0
        %v1020 = vadd.f32 0.0, %v1019
        %v1021 = vpop.f32.mrf.mxu0
        %v1022 = vadd.f32 0.0, %v1021
        %v1023 = vpop.f32.mrf.mxu0
        %v1024 = vadd.f32 0.0, %v1023
        %1025 = vdwg.mxu0
        %1026 = vmatprep.subr.bf16.mxu0 0
        %1027 = vmatpush1.bf16.msra.mxu0 %v958
        %1028 = vmatprep.subr.bf16.mxu0 0
        %1029 = vmatpush1.bf16.msra.mxu0 %v955
        %1030 = vmatprep.subr.bf16.mxu0 0
        %1031 = vmatpush1.bf16.msra.mxu0 %v952
        %1032 = vmatprep.subr.bf16.mxu0 0
        %1033 = vmatpush1.bf16.msra.mxu0 %v949
        %1034 = vmatprep.subr.bf16.mxu0 0
        %1035 = vmatpush1.bf16.msra.mxu0 %v946
        %1036 = vmatprep.subr.bf16.mxu0 0
        %1037 = vmatpush1.bf16.msra.mxu0 %v943
        %1038 = vmatprep.subr.bf16.mxu0 0
        %1039 = vmatpush1.bf16.msra.mxu0 %v940
        %1040 = vmatprep.subr.bf16.mxu0 0
        %1041 = vmatpush1.bf16.msra.mxu0 %v937
        %1042 = vmatprep.subr.bf16.mxu0 0
        %1043 = vmatpush2.bf16.msra.mxu0 0
        %1044 = vmatprep.subr.bf16.mxu0 0
        %1045 = vmatpush2.bf16.msra.mxu0 0
        %1046 = vmatprep.subr.bf16.mxu0 0
        %1047 = vmatpush2.bf16.msra.mxu0 0
        %1048 = vmatprep.subr.bf16.mxu0 0
        %1049 = vmatpush2.bf16.msra.mxu0 0
        %1050 = vmatprep.subr.bf16.mxu0 0
        %1051 = vmatpush2.bf16.msra.mxu0 0
        %1052 = vmatprep.subr.bf16.mxu0 0
        %1053 = vmatpush2.bf16.msra.mxu0 0
        %1054 = vmatprep.subr.bf16.mxu0 0
        %1055 = vmatpush2.bf16.msra.mxu0 0
        %1056 = vmatprep.subr.bf16.mxu0 0
        %1057 = vmatpush2.bf16.msra.mxu0 0
        %1058 = vmatprep.mubr.bf16.mxu0 0
        %1059 = vmatmul.mubr.bf16.gmra.mxu0 %v821
        %v1060 = vpop.f32.mrf.mxu0
        %v1061 = vadd.f32 0.0, %v1060
        %v1062 = vpop.f32.mrf.mxu0
        %v1063 = vpop.f32.mrf.mxu0
        %v1064 = vadd.f32 0.0, %v1063
        %v1065 = vpop.f32.mrf.mxu0
        %1066 = vdwg.mxu0
        %v1067 = vrot.slane %v1018, 7
        %v1068 = vrot.slane %v1022, 7
        %v1069 = vsel %vm775, %v1067, %v1068
        %v1070 = vsel %vm775, %v1068, %v1067
        %v1071 = vsel %vm354, 0.0, %v1070
        %v1072 = vsel %vm355, 0.0, %v1069
        %v1073 = vrot.slane %v1061, 1
        %v1074 = vrot.slane %v1064, 1
        %v1075 = vsel %vm782, %v1073, %v1074
        %v1076 = vsel %vm782, %v1074, %v1073
        %v1077 = vsel %vm356, 0.0, %v1075
        %v1078 = vsel %vm357, 0.0, %v1076
        %v1079 = vadd.f32 %v1020, %v1071
        %v1080 = vadd.f32 %v1024, %v1072
        %v1081 = vadd.f32 %v1079, %v1077
        %v1082 = vadd.f32 %v1080, %v1078
        %v1083 = vlaneseq
        %v1084 = vshrl.u32 %v1083, 7
        %v1085 = vsub.s32 1, %v1084
        %v1086 = vrot.slane %v526, %v1085
        %v1087 = vadd.f32 %v1081, %v1086
        %v1088 = vadd.f32 %v1082, %v1086
        %v1089 = vmul.f32 %v1087, 0.5
        %v1090 = vmul.f32 %v1088, 0.5
        %v1091 = vmul.f32 %v1087, 0.044715
        %v1092 = vmul.f32 %v1088, 0.044715
        %v1093 = vmul.f32 %v1091, %v1087
        %v1094 = vmul.f32 %v1092, %v1088
        %v1095 = vmul.f32 %v1093, %v1087
        %v1096 = vmul.f32 %v1094, %v1088
        %v1097 = vadd.f32 %v1087, %v1095
        %v1098 = vadd.f32 %v1088, %v1096
        %v1099 = vmul.f32 %v1097, 0.7978846
        %v1100 = vmul.f32 %v1098, 0.7978846
        %v1101 = vtanh.pop %v1099
        %v1102 = vtanh.pop %v1100
        %v1103 = vadd.f32 %v1101, 1.0
        %v1104 = vadd.f32 %v1102, 1.0
        %v1105 = vmul.f32 %v1089, %v1103
        %v1106 = vmul.f32 %v1090, %v1104
        %v1107 = vlaneseq
        %v1108 = vshrl.u32 %v1107, 7
        %v1109 = vsub.s32 1, %v1108
        %v1110 = vrot.slane %v527, %v1109
        %v1111 = vadd.f32 %v1105, %v1110
        %v1112 = vadd.f32 %v1106, %v1110
        %v1113 = vadd.f32 %v1111, %v524
        %v1114 = vadd.f32 %v1112, %v525
        %v1115 = vmul.f32 %v1113, 0.70710677
        %v1116 = vmul.f32 %v1114, 0.70710677
        %v1117 = vpack.c.bf16 %v1116, %v1115
        %s1118 = scalar_lea.vmem [#allocation7], 384
        %v1119 = vld [vmem:[%s1118] sm:$0xff]
        %v1120 = vld [vmem:[%s1118 + $0x8] sm:$0xf]
        %v1121 = vld [vmem:[%s1118 + $0xc] sm:$0xff]
        %v1122 = vld [vmem:[%s1118 + $0x14] sm:$0xf]
        %v1123 = vld [vmem:[%s1118 + $0x18] sm:$0xff]
        %v1124 = vld [vmem:[%s1118 + $0x20] sm:$0xf]
        %v1125 = vld [vmem:[%s1118 + $0x24] sm:$0xff]
        %v1126 = vld [vmem:[%s1118 + $0x2c] sm:$0xf]
        %v1127 = vld [vmem:[%s1118 + $0x30] sm:$0xff]
        %v1128 = vld [vmem:[%s1118 + $0x38] sm:$0xf]
        %v1129 = vld [vmem:[%s1118 + $0x3c] sm:$0xff]
        %v1130 = vld [vmem:[%s1118 + $0x44] sm:$0xf]
        %v1131 = vld [vmem:[%s1118 + $0x48] sm:$0xff]
        %v1132 = vld [vmem:[%s1118 + $0x50] sm:$0xf]
        %v1133 = vld [vmem:[%s1118 + $0x54] sm:$0xff]
        %v1134 = vld [vmem:[%s1118 + $0x5c] sm:$0xf]
        %v1135 = vld [vmem:[%s1118 + $0x60] sm:$0xff]
        %v1136 = vld [vmem:[%s1118 + $0x68] sm:$0xf]
        %v1137 = vld [vmem:[%s1118 + $0x6c] sm:$0xff]
        %v1138 = vld [vmem:[%s1118 + $0x74] sm:$0xf]
        %v1139 = vld [vmem:[%s1118 + $0x78] sm:$0xff]
        %v1140 = vld [vmem:[%s1118 + $0x80] sm:$0xf]
        %v1141 = vld [vmem:[%s1118 + $0x84] sm:$0xff]
        %v1142 = vld [vmem:[%s1118 + $0x8c] sm:$0xf]
        %v1143 = vld [vmem:[%s1118 + $0x90] sm:$0xff]
        %v1144 = vld [vmem:[%s1118 + $0x98] sm:$0xf]
        %v1145 = vld [vmem:[%s1118 + $0x9c] sm:$0xff]
        %v1146 = vld [vmem:[%s1118 + $0xa4] sm:$0xf]
        %v1147 = vld [vmem:[%s1118 + $0xa8] sm:$0xff]
        %v1148 = vld [vmem:[%s1118 + $0xb0] sm:$0xf]
        %v1149 = vld [vmem:[%s1118 + $0xb4] sm:$0xff]
        %v1150 = vld [vmem:[%s1118 + $0xbc] sm:$0xf]
        %v1183 = vunpack.c.l.b16 %v1119
        %v1184 = vunpack.c.h.b16 %v1119
        %v1185 = vunpack.c.l.b16 %v1120
        %v1186 = vunpack.c.l.b16 %v1121
        %v1187 = vunpack.c.h.b16 %v1121
        %v1188 = vunpack.c.l.b16 %v1122
        %v1189 = vunpack.c.l.b16 %v1123
        %v1190 = vunpack.c.h.b16 %v1123
        %v1191 = vunpack.c.l.b16 %v1124
        %v1192 = vunpack.c.l.b16 %v1125
        %v1193 = vunpack.c.h.b16 %v1125
        %v1194 = vunpack.c.l.b16 %v1126
        %v1195 = vunpack.c.l.b16 %v1127
        %v1196 = vunpack.c.h.b16 %v1127
        %v1197 = vunpack.c.l.b16 %v1128
        %v1198 = vunpack.c.l.b16 %v1129
        %v1199 = vunpack.c.h.b16 %v1129
        %v1200 = vunpack.c.l.b16 %v1130
        %v1201 = vunpack.c.l.b16 %v1131
        %v1202 = vunpack.c.h.b16 %v1131
        %v1203 = vunpack.c.l.b16 %v1132
        %v1204 = vunpack.c.l.b16 %v1133
        %v1205 = vunpack.c.h.b16 %v1133
        %v1206 = vunpack.c.l.b16 %v1134
        %v1207 = vunpack.c.l.b16 %v1135
        %v1208 = vunpack.c.h.b16 %v1135
        %v1209 = vunpack.c.l.b16 %v1136
        %v1210 = vunpack.c.l.b16 %v1137
        %v1211 = vunpack.c.h.b16 %v1137
        %v1212 = vunpack.c.l.b16 %v1138
        %v1213 = vunpack.c.l.b16 %v1139
        %v1214 = vunpack.c.h.b16 %v1139
        %v1215 = vunpack.c.l.b16 %v1140
        %v1216 = vunpack.c.l.b16 %v1141
        %v1217 = vunpack.c.h.b16 %v1141
        %v1218 = vunpack.c.l.b16 %v1142
        %v1219 = vunpack.c.l.b16 %v1143
        %v1220 = vunpack.c.h.b16 %v1143
        %v1221 = vunpack.c.l.b16 %v1144
        %v1222 = vunpack.c.l.b16 %v1145
        %v1223 = vunpack.c.h.b16 %v1145
        %v1224 = vunpack.c.l.b16 %v1146
        %v1225 = vunpack.c.l.b16 %v1147
        %v1226 = vunpack.c.h.b16 %v1147
        %v1227 = vunpack.c.l.b16 %v1148
        %v1228 = vunpack.c.l.b16 %v1149
        %v1229 = vunpack.c.h.b16 %v1149
        %v1230 = vunpack.c.l.b16 %v1150
        %v1231 = vpack.c.b16 %v1186, %v1183
        %v1232 = vpack.c.b16 %v1187, %v1184
        %v1233 = vpack.c.b16 %v1188, %v1185
        %v1234 = vpack.c.b16 %v1192, %v1189
        %v1235 = vpack.c.b16 %v1193, %v1190
        %v1236 = vpack.c.b16 %v1194, %v1191
        %v1237 = vpack.c.b16 %v1198, %v1195
        %v1238 = vpack.c.b16 %v1199, %v1196
        %v1239 = vpack.c.b16 %v1200, %v1197
        %v1240 = vpack.c.b16 %v1204, %v1201
        %v1241 = vpack.c.b16 %v1205, %v1202
        %v1242 = vpack.c.b16 %v1206, %v1203
        %v1243 = vpack.c.b16 %v1210, %v1207
        %v1244 = vpack.c.b16 %v1211, %v1208
        %v1245 = vpack.c.b16 %v1212, %v1209
        %v1246 = vpack.c.b16 %v1216, %v1213
        %v1247 = vpack.c.b16 %v1217, %v1214
        %v1248 = vpack.c.b16 %v1218, %v1215
        %v1249 = vpack.c.b16 %v1222, %v1219
        %v1250 = vpack.c.b16 %v1223, %v1220
        %v1251 = vpack.c.b16 %v1224, %v1221
        %v1252 = vpack.c.b16 %v1228, %v1225
        %v1253 = vpack.c.b16 %v1229, %v1226
        %v1254 = vpack.c.b16 %v1230, %v1227
        %1279 = vmatprep.subr.bf16.mxu0 %v1253
        %1280 = vmatpush1.bf16.msra.mxu0 %v1252
        %1281 = vmatprep.subr.bf16.mxu0 %v1250
        %1282 = vmatpush1.bf16.msra.mxu0 %v1249
        %1283 = vmatprep.subr.bf16.mxu0 %v1247
        %1284 = vmatpush1.bf16.msra.mxu0 %v1246
        %1285 = vmatprep.subr.bf16.mxu0 %v1244
        %1286 = vmatpush1.bf16.msra.mxu0 %v1243
        %1287 = vmatprep.subr.bf16.mxu0 %v1241
        %1288 = vmatpush1.bf16.msra.mxu0 %v1240
        %1289 = vmatprep.subr.bf16.mxu0 %v1238
        %1290 = vmatpush1.bf16.msra.mxu0 %v1237
        %1291 = vmatprep.subr.bf16.mxu0 %v1235
        %1292 = vmatpush1.bf16.msra.mxu0 %v1234
        %1293 = vmatprep.subr.bf16.mxu0 %v1232
        %1294 = vmatpush1.bf16.msra.mxu0 %v1231
        %1295 = vmatprep.subr.bf16.mxu0 0
        %1296 = vmatpush2.bf16.msra.mxu0 0
        %1297 = vmatprep.subr.bf16.mxu0 0
        %1298 = vmatpush2.bf16.msra.mxu0 0
        %1299 = vmatprep.subr.bf16.mxu0 0
        %1300 = vmatpush2.bf16.msra.mxu0 0
        %1301 = vmatprep.subr.bf16.mxu0 0
        %1302 = vmatpush2.bf16.msra.mxu0 0
        %1303 = vmatprep.subr.bf16.mxu0 0
        %1304 = vmatpush2.bf16.msra.mxu0 0
        %1305 = vmatprep.subr.bf16.mxu0 0
        %1306 = vmatpush2.bf16.msra.mxu0 0
        %1307 = vmatprep.subr.bf16.mxu0 0
        %1308 = vmatpush2.bf16.msra.mxu0 0
        %1309 = vmatprep.subr.bf16.mxu0 0
        %1310 = vmatpush2.bf16.msra.mxu0 0
        %1311 = vmatprep.mubr.bf16.mxu0 0
        %1312 = vmatmul.mubr.bf16.gmra.mxu0 %v1117
        %v1313 = vpop.f32.mrf.mxu0
        %v1314 = vadd.f32 0.0, %v1313
        %v1315 = vpop.f32.mrf.mxu0
        %v1316 = vadd.f32 0.0, %v1315
        %v1317 = vpop.f32.mrf.mxu0
        %v1318 = vadd.f32 0.0, %v1317
        %v1319 = vpop.f32.mrf.mxu0
        %v1320 = vadd.f32 0.0, %v1319
        %1321 = vdwg.mxu0
        %1322 = vmatprep.subr.bf16.mxu0 0
        %1323 = vmatpush1.bf16.msra.mxu0 %v1254
        %1324 = vmatprep.subr.bf16.mxu0 0
        %1325 = vmatpush1.bf16.msra.mxu0 %v1251
        %1326 = vmatprep.subr.bf16.mxu0 0
        %1327 = vmatpush1.bf16.msra.mxu0 %v1248
        %1328 = vmatprep.subr.bf16.mxu0 0
        %1329 = vmatpush1.bf16.msra.mxu0 %v1245
        %1330 = vmatprep.subr.bf16.mxu0 0
        %1331 = vmatpush1.bf16.msra.mxu0 %v1242
        %1332 = vmatprep.subr.bf16.mxu0 0
        %1333 = vmatpush1.bf16.msra.mxu0 %v1239
        %1334 = vmatprep.subr.bf16.mxu0 0
        %1335 = vmatpush1.bf16.msra.mxu0 %v1236
        %1336 = vmatprep.subr.bf16.mxu0 0
        %1337 = vmatpush1.bf16.msra.mxu0 %v1233
        %1338 = vmatprep.subr.bf16.mxu0 0
        %1339 = vmatpush2.bf16.msra.mxu0 0
        %1340 = vmatprep.subr.bf16.mxu0 0
        %1341 = vmatpush2.bf16.msra.mxu0 0
        %1342 = vmatprep.subr.bf16.mxu0 0
        %1343 = vmatpush2.bf16.msra.mxu0 0
        %1344 = vmatprep.subr.bf16.mxu0 0
        %1345 = vmatpush2.bf16.msra.mxu0 0
        %1346 = vmatprep.subr.bf16.mxu0 0
        %1347 = vmatpush2.bf16.msra.mxu0 0
        %1348 = vmatprep.subr.bf16.mxu0 0
        %1349 = vmatpush2.bf16.msra.mxu0 0
        %1350 = vmatprep.subr.bf16.mxu0 0
        %1351 = vmatpush2.bf16.msra.mxu0 0
        %1352 = vmatprep.subr.bf16.mxu0 0
        %1353 = vmatpush2.bf16.msra.mxu0 0
        %1354 = vmatprep.mubr.bf16.mxu0 0
        %1355 = vmatmul.mubr.bf16.gmra.mxu0 %v1117
        %v1356 = vpop.f32.mrf.mxu0
        %v1357 = vadd.f32 0.0, %v1356
        %v1358 = vpop.f32.mrf.mxu0
        %v1359 = vpop.f32.mrf.mxu0
        %v1360 = vadd.f32 0.0, %v1359
        %v1361 = vpop.f32.mrf.mxu0
        %1362 = vdwg.mxu0
        %v1363 = vrot.slane %v1314, 7
        %v1364 = vrot.slane %v1318, 7
        %v1365 = vsel %vm775, %v1363, %v1364
        %v1366 = vsel %vm775, %v1364, %v1363
        %v1367 = vsel %vm354, 0.0, %v1366
        %v1368 = vsel %vm355, 0.0, %v1365
        %v1369 = vrot.slane %v1357, 1
        %v1370 = vrot.slane %v1360, 1
        %v1371 = vsel %vm782, %v1369, %v1370
        %v1372 = vsel %vm782, %v1370, %v1369
        %v1373 = vsel %vm356, 0.0, %v1371
        %v1374 = vsel %vm357, 0.0, %v1372
        %v1375 = vadd.f32 %v1316, %v1367
        %v1376 = vadd.f32 %v1320, %v1368
        %v1377 = vadd.f32 %v1375, %v1373
        %v1378 = vadd.f32 %v1376, %v1374
        %v1379 = vlaneseq
        %v1380 = vshrl.u32 %v1379, 7
        %v1381 = vsub.s32 2, %v1380
        %v1382 = vrot.slane %v526, %v1381
        %v1383 = vadd.f32 %v1377, %v1382
        %v1384 = vadd.f32 %v1378, %v1382
        %v1385 = vmul.f32 %v1383, 0.5
        %v1386 = vmul.f32 %v1384, 0.5
        %v1387 = vmul.f32 %v1383, 0.044715
        %v1388 = vmul.f32 %v1384, 0.044715
        %v1389 = vmul.f32 %v1387, %v1383
        %v1390 = vmul.f32 %v1388, %v1384
        %v1391 = vmul.f32 %v1389, %v1383
        %v1392 = vmul.f32 %v1390, %v1384
        %v1393 = vadd.f32 %v1383, %v1391
        %v1394 = vadd.f32 %v1384, %v1392
        %v1395 = vmul.f32 %v1393, 0.7978846
        %v1396 = vmul.f32 %v1394, 0.7978846
        %v1397 = vtanh.pop %v1395
        %v1398 = vtanh.pop %v1396
        %v1399 = vadd.f32 %v1397, 1.0
        %v1400 = vadd.f32 %v1398, 1.0
        %v1401 = vmul.f32 %v1385, %v1399
        %v1402 = vmul.f32 %v1386, %v1400
        %v1403 = vlaneseq
        %v1404 = vshrl.u32 %v1403, 7
        %v1405 = vsub.s32 2, %v1404
        %v1406 = vrot.slane %v527, %v1405
        %v1407 = vadd.f32 %v1401, %v1406
        %v1408 = vadd.f32 %v1402, %v1406
        %v1409 = vpack.c.bf16 %v1408, %v1407
        %s1410 = scalar_lea.vmem [#allocation7], 576
        %v1411 = vld [vmem:[%s1410] sm:$0xff]
        %v1412 = vld [vmem:[%s1410 + $0x8] sm:$0xf]
        %v1413 = vld [vmem:[%s1410 + $0xc] sm:$0xff]
        %v1414 = vld [vmem:[%s1410 + $0x14] sm:$0xf]
        %v1415 = vld [vmem:[%s1410 + $0x18] sm:$0xff]
        %v1416 = vld [vmem:[%s1410 + $0x20] sm:$0xf]
        %v1417 = vld [vmem:[%s1410 + $0x24] sm:$0xff]
        %v1418 = vld [vmem:[%s1410 + $0x2c] sm:$0xf]
        %v1419 = vld [vmem:[%s1410 + $0x30] sm:$0xff]
        %v1420 = vld [vmem:[%s1410 + $0x38] sm:$0xf]
        %v1421 = vld [vmem:[%s1410 + $0x3c] sm:$0xff]
        %v1422 = vld [vmem:[%s1410 + $0x44] sm:$0xf]
        %v1423 = vld [vmem:[%s1410 + $0x48] sm:$0xff]
        %v1424 = vld [vmem:[%s1410 + $0x50] sm:$0xf]
        %v1425 = vld [vmem:[%s1410 + $0x54] sm:$0xff]
        %v1426 = vld [vmem:[%s1410 + $0x5c] sm:$0xf]
        %v1427 = vld [vmem:[%s1410 + $0x60] sm:$0xff]
        %v1428 = vld [vmem:[%s1410 + $0x68] sm:$0xf]
        %v1429 = vld [vmem:[%s1410 + $0x6c] sm:$0xff]
        %v1430 = vld [vmem:[%s1410 + $0x74] sm:$0xf]
        %v1431 = vld [vmem:[%s1410 + $0x78] sm:$0xff]
        %v1432 = vld [vmem:[%s1410 + $0x80] sm:$0xf]
        %v1433 = vld [vmem:[%s1410 + $0x84] sm:$0xff]
        %v1434 = vld [vmem:[%s1410 + $0x8c] sm:$0xf]
        %v1435 = vld [vmem:[%s1410 + $0x90] sm:$0xff]
        %v1436 = vld [vmem:[%s1410 + $0x98] sm:$0xf]
        %v1437 = vld [vmem:[%s1410 + $0x9c] sm:$0xff]
        %v1438 = vld [vmem:[%s1410 + $0xa4] sm:$0xf]
        %v1439 = vld [vmem:[%s1410 + $0xa8] sm:$0xff]
        %v1440 = vld [vmem:[%s1410 + $0xb0] sm:$0xf]
        %v1441 = vld [vmem:[%s1410 + $0xb4] sm:$0xff]
        %v1442 = vld [vmem:[%s1410 + $0xbc] sm:$0xf]
        %v1475 = vunpack.c.l.b16 %v1411
        %v1476 = vunpack.c.h.b16 %v1411
        %v1477 = vunpack.c.l.b16 %v1412
        %v1478 = vunpack.c.l.b16 %v1413
        %v1479 = vunpack.c.h.b16 %v1413
        %v1480 = vunpack.c.l.b16 %v1414
        %v1481 = vunpack.c.l.b16 %v1415
        %v1482 = vunpack.c.h.b16 %v1415
        %v1483 = vunpack.c.l.b16 %v1416
        %v1484 = vunpack.c.l.b16 %v1417
        %v1485 = vunpack.c.h.b16 %v1417
        %v1486 = vunpack.c.l.b16 %v1418
        %v1487 = vunpack.c.l.b16 %v1419
        %v1488 = vunpack.c.h.b16 %v1419
        %v1489 = vunpack.c.l.b16 %v1420
        %v1490 = vunpack.c.l.b16 %v1421
        %v1491 = vunpack.c.h.b16 %v1421
        %v1492 = vunpack.c.l.b16 %v1422
        %v1493 = vunpack.c.l.b16 %v1423
        %v1494 = vunpack.c.h.b16 %v1423
        %v1495 = vunpack.c.l.b16 %v1424
        %v1496 = vunpack.c.l.b16 %v1425
        %v1497 = vunpack.c.h.b16 %v1425
        %v1498 = vunpack.c.l.b16 %v1426
        %v1499 = vunpack.c.l.b16 %v1427
        %v1500 = vunpack.c.h.b16 %v1427
        %v1501 = vunpack.c.l.b16 %v1428
        %v1502 = vunpack.c.l.b16 %v1429
        %v1503 = vunpack.c.h.b16 %v1429
        %v1504 = vunpack.c.l.b16 %v1430
        %v1505 = vunpack.c.l.b16 %v1431
        %v1506 = vunpack.c.h.b16 %v1431
        %v1507 = vunpack.c.l.b16 %v1432
        %v1508 = vunpack.c.l.b16 %v1433
        %v1509 = vunpack.c.h.b16 %v1433
        %v1510 = vunpack.c.l.b16 %v1434
        %v1511 = vunpack.c.l.b16 %v1435
        %v1512 = vunpack.c.h.b16 %v1435
        %v1513 = vunpack.c.l.b16 %v1436
        %v1514 = vunpack.c.l.b16 %v1437
        %v1515 = vunpack.c.h.b16 %v1437
        %v1516 = vunpack.c.l.b16 %v1438
        %v1517 = vunpack.c.l.b16 %v1439
        %v1518 = vunpack.c.h.b16 %v1439
        %v1519 = vunpack.c.l.b16 %v1440
        %v1520 = vunpack.c.l.b16 %v1441
        %v1521 = vunpack.c.h.b16 %v1441
        %v1522 = vunpack.c.l.b16 %v1442
        %v1523 = vpack.c.b16 %v1478, %v1475
        %v1524 = vpack.c.b16 %v1479, %v1476
        %v1525 = vpack.c.b16 %v1480, %v1477
        %v1526 = vpack.c.b16 %v1484, %v1481
        %v1527 = vpack.c.b16 %v1485, %v1482
        %v1528 = vpack.c.b16 %v1486, %v1483
        %v1529 = vpack.c.b16 %v1490, %v1487
        %v1530 = vpack.c.b16 %v1491, %v1488
        %v1531 = vpack.c.b16 %v1492, %v1489
        %v1532 = vpack.c.b16 %v1496, %v1493
        %v1533 = vpack.c.b16 %v1497, %v1494
        %v1534 = vpack.c.b16 %v1498, %v1495
        %v1535 = vpack.c.b16 %v1502, %v1499
        %v1536 = vpack.c.b16 %v1503, %v1500
        %v1537 = vpack.c.b16 %v1504, %v1501
        %v1538 = vpack.c.b16 %v1508, %v1505
        %v1539 = vpack.c.b16 %v1509, %v1506
        %v1540 = vpack.c.b16 %v1510, %v1507
        %v1541 = vpack.c.b16 %v1514, %v1511
        %v1542 = vpack.c.b16 %v1515, %v1512
        %v1543 = vpack.c.b16 %v1516, %v1513
        %v1544 = vpack.c.b16 %v1520, %v1517
        %v1545 = vpack.c.b16 %v1521, %v1518
        %v1546 = vpack.c.b16 %v1522, %v1519
        %1571 = vmatprep.subr.bf16.mxu0 %v1545
        %1572 = vmatpush1.bf16.msra.mxu0 %v1544
        %1573 = vmatprep.subr.bf16.mxu0 %v1542
        %1574 = vmatpush1.bf16.msra.mxu0 %v1541
        %1575 = vmatprep.subr.bf16.mxu0 %v1539
        %1576 = vmatpush1.bf16.msra.mxu0 %v1538
        %1577 = vmatprep.subr.bf16.mxu0 %v1536
        %1578 = vmatpush1.bf16.msra.mxu0 %v1535
        %1579 = vmatprep.subr.bf16.mxu0 %v1533
        %1580 = vmatpush1.bf16.msra.mxu0 %v1532
        %1581 = vmatprep.subr.bf16.mxu0 %v1530
        %1582 = vmatpush1.bf16.msra.mxu0 %v1529
        %1583 = vmatprep.subr.bf16.mxu0 %v1527
        %1584 = vmatpush1.bf16.msra.mxu0 %v1526
        %1585 = vmatprep.subr.bf16.mxu0 %v1524
        %1586 = vmatpush1.bf16.msra.mxu0 %v1523
        %1587 = vmatprep.subr.bf16.mxu0 0
        %1588 = vmatpush2.bf16.msra.mxu0 0
        %1589 = vmatprep.subr.bf16.mxu0 0
        %1590 = vmatpush2.bf16.msra.mxu0 0
        %1591 = vmatprep.subr.bf16.mxu0 0
        %1592 = vmatpush2.bf16.msra.mxu0 0
        %1593 = vmatprep.subr.bf16.mxu0 0
        %1594 = vmatpush2.bf16.msra.mxu0 0
        %1595 = vmatprep.subr.bf16.mxu0 0
        %1596 = vmatpush2.bf16.msra.mxu0 0
        %1597 = vmatprep.subr.bf16.mxu0 0
        %1598 = vmatpush2.bf16.msra.mxu0 0
        %1599 = vmatprep.subr.bf16.mxu0 0
        %1600 = vmatpush2.bf16.msra.mxu0 0
        %1601 = vmatprep.subr.bf16.mxu0 0
        %1602 = vmatpush2.bf16.msra.mxu0 0
        %1603 = vmatprep.mubr.bf16.mxu0 0
        %1604 = vmatmul.mubr.bf16.gmra.mxu0 %v1409
        %v1605 = vpop.f32.mrf.mxu0
        %v1606 = vadd.f32 0.0, %v1605
        %v1607 = vpop.f32.mrf.mxu0
        %v1608 = vadd.f32 0.0, %v1607
        %v1609 = vpop.f32.mrf.mxu0
        %v1610 = vadd.f32 0.0, %v1609
        %v1611 = vpop.f32.mrf.mxu0
        %v1612 = vadd.f32 0.0, %v1611
        %1613 = vdwg.mxu0
        %1614 = vmatprep.subr.bf16.mxu0 0
        %1615 = vmatpush1.bf16.msra.mxu0 %v1546
        %1616 = vmatprep.subr.bf16.mxu0 0
        %1617 = vmatpush1.bf16.msra.mxu0 %v1543
        %1618 = vmatprep.subr.bf16.mxu0 0
        %1619 = vmatpush1.bf16.msra.mxu0 %v1540
        %1620 = vmatprep.subr.bf16.mxu0 0
        %1621 = vmatpush1.bf16.msra.mxu0 %v1537
        %1622 = vmatprep.subr.bf16.mxu0 0
        %1623 = vmatpush1.bf16.msra.mxu0 %v1534
        %1624 = vmatprep.subr.bf16.mxu0 0
        %1625 = vmatpush1.bf16.msra.mxu0 %v1531
        %1626 = vmatprep.subr.bf16.mxu0 0
        %1627 = vmatpush1.bf16.msra.mxu0 %v1528
        %1628 = vmatprep.subr.bf16.mxu0 0
        %1629 = vmatpush1.bf16.msra.mxu0 %v1525
        %1630 = vmatprep.subr.bf16.mxu0 0
        %1631 = vmatpush2.bf16.msra.mxu0 0
        %1632 = vmatprep.subr.bf16.mxu0 0
        %1633 = vmatpush2.bf16.msra.mxu0 0
        %1634 = vmatprep.subr.bf16.mxu0 0
        %1635 = vmatpush2.bf16.msra.mxu0 0
        %1636 = vmatprep.subr.bf16.mxu0 0
        %1637 = vmatpush2.bf16.msra.mxu0 0
        %1638 = vmatprep.subr.bf16.mxu0 0
        %1639 = vmatpush2.bf16.msra.mxu0 0
        %1640 = vmatprep.subr.bf16.mxu0 0
        %1641 = vmatpush2.bf16.msra.mxu0 0
        %1642 = vmatprep.subr.bf16.mxu0 0
        %1643 = vmatpush2.bf16.msra.mxu0 0
        %1644 = vmatprep.subr.bf16.mxu0 0
        %1645 = vmatpush2.bf16.msra.mxu0 0
        %1646 = vmatprep.mubr.bf16.mxu0 0
        %1647 = vmatmul.mubr.bf16.gmra.mxu0 %v1409
        %v1648 = vpop.f32.mrf.mxu0
        %v1649 = vadd.f32 0.0, %v1648
        %v1650 = vpop.f32.mrf.mxu0
        %v1651 = vpop.f32.mrf.mxu0
        %v1652 = vadd.f32 0.0, %v1651
        %v1653 = vpop.f32.mrf.mxu0
        %1654 = vdwg.mxu0
        %v1655 = vrot.slane %v1606, 7
        %v1656 = vrot.slane %v1610, 7
        %v1657 = vsel %vm775, %v1655, %v1656
        %v1658 = vsel %vm775, %v1656, %v1655
        %v1659 = vsel %vm354, 0.0, %v1658
        %v1660 = vsel %vm355, 0.0, %v1657
        %v1661 = vrot.slane %v1649, 1
        %v1662 = vrot.slane %v1652, 1
        %v1663 = vsel %vm782, %v1661, %v1662
        %v1664 = vsel %vm782, %v1662, %v1661
        %v1665 = vsel %vm356, 0.0, %v1663
        %v1666 = vsel %vm357, 0.0, %v1664
        %v1667 = vadd.f32 %v1608, %v1659
        %v1668 = vadd.f32 %v1612, %v1660
        %v1669 = vadd.f32 %v1667, %v1665
        %v1670 = vadd.f32 %v1668, %v1666
        %v1671 = vlaneseq
        %v1672 = vshrl.u32 %v1671, 7
        %v1673 = vsub.s32 3, %v1672
        %v1674 = vrot.slane %v526, %v1673
        %v1675 = vadd.f32 %v1669, %v1674
        %v1676 = vadd.f32 %v1670, %v1674
        %v1677 = vmul.f32 %v1675, 0.5
        %v1678 = vmul.f32 %v1676, 0.5
        %v1679 = vmul.f32 %v1675, 0.044715
        %v1680 = vmul.f32 %v1676, 0.044715
        %v1681 = vmul.f32 %v1679, %v1675
        %v1682 = vmul.f32 %v1680, %v1676
        %v1683 = vmul.f32 %v1681, %v1675
        %v1684 = vmul.f32 %v1682, %v1676
        %v1685 = vadd.f32 %v1675, %v1683
        %v1686 = vadd.f32 %v1676, %v1684
        %v1687 = vmul.f32 %v1685, 0.7978846
        %v1688 = vmul.f32 %v1686, 0.7978846
        %v1689 = vtanh.pop %v1687
        %v1690 = vtanh.pop %v1688
        %v1691 = vadd.f32 %v1689, 1.0
        %v1692 = vadd.f32 %v1690, 1.0
        %v1693 = vmul.f32 %v1677, %v1691
        %v1694 = vmul.f32 %v1678, %v1692
        %v1695 = vlaneseq
        %v1696 = vshrl.u32 %v1695, 7
        %v1697 = vsub.s32 3, %v1696
        %v1698 = vrot.slane %v527, %v1697
        %v1699 = vadd.f32 %v1693, %v1698
        %v1700 = vadd.f32 %v1694, %v1698
        %v1701 = vadd.f32 %v1699, %v1115
        %v1702 = vadd.f32 %v1700, %v1116
        %v1703 = vmul.f32 %v1701, 0.70710677
        %v1704 = vmul.f32 %v1702, 0.70710677
        %1705 = vst [vmem:[%s321] sm:$0xff] %v1703
        %1706 = vst [vmem:[%s321 + $0x8] sm:$0xff] %v1704
        %s1707 = sand.u32 %s169, 1
        %s1708 = scalar_lea.sflag [#allocation4], %s1707
        %s1709 = sand.u32 %s169, 1
        %s1710 = smul.addr %s1709, 16
        %s1711 = scalar_lea.vmem [#allocation10], %s1710
        // Predicated region
        $region61: #{tpu_custom_call.1} parent=43 // pred_check
          %p1712 = pneg %p179
        $region62: #{tpu_custom_call.1} parent=43 // pred_check_branch
          %1714 = sbr.rel (%p1712) target = $region64
        $region63: #{tpu_custom_call.1} parent=43 // pred_region
          %s1716 = ssub.s32 256, 256
          %1717 = vsyncadd %s1708, %s1716
          %s1718 = smul.addr %s25, 2
          %s1719 = smul.addr %s1718, 128
          %s1720 = scalar_lea.hbm %s6, %s1719
          %s1721 = sshll.u32 %s1711, 4
          %s1722 = int_to_ptr.vmem [resolvable:$true] %s1721
          %1727 = dma.vmem_to_hbm [thread:$0]  %s1722, 256, %s1720, %s1708, 128, 128, 8
        $region64: #{tpu_custom_call.1} parent=43 // pred_fallthru
          _
      $region44: #{tpu_custom_call.1} parent=5 // pred_fallthru
        _
      %p1728 = scmp.le.s32.totalorder 2, %s20
      // Predicated region
      $region65: #{tpu_custom_call.1} parent=5 // pred_check
        %p1729 = pneg %p1728
      $region66: #{tpu_custom_call.1} parent=5 // pred_check_branch
        %1731 = sbr.rel (%p1729) target = $region68
      $region67: #{tpu_custom_call.1} parent=5 // pred_region
        %s1732 = ssub.s32 %s20, 2
        // Predicated region
        $region69: #{tpu_custom_call.1} parent=67 // pred_check
          %p1733 = pneg %p185
        $region70: #{tpu_custom_call.1} parent=67 // pred_check_branch
          %1735 = sbr.rel (%p1733) target = $region72
        $region71: #{tpu_custom_call.1} parent=67 // pred_region
          %s1736 = sand.u32 %s170, 1
          %s1737 = scalar_lea.sflag [#allocation4], %s1736
          %s1738 = sand.u32 %s170, 1
          %s1739 = smul.addr %s1738, 16
          %s1740 = scalar_lea.vmem [#allocation10], %s1739
          %1741 = dma.done %s1737, 256
        $region72: #{tpu_custom_call.1} parent=67 // pred_fallthru
          _
      $region68: #{tpu_custom_call.1} parent=5 // pred_fallthru
        _
    $region6: #{tpu_custom_call.1} parent=1 // loop_footer
      %s24 = sadd.s32 1, %s20
    $region7: #{tpu_custom_call.1} parent=1 // loop_footer_branch
      %19 = sbr.rel target = $region3
    $region8: #{tpu_custom_call.1} parent=1 // loop_exit
      _
    %1742 = vsyncpa [#allocation3], 1
    %s1743 = scalar_lea.sflag [#allocation3], 1
    %1744 = vsyncpa %s1743, 1
    %1745 = vsyncpa [#allocation6], 1
    %1746 = vsyncpa [#allocation9], 1
    %1747 = vsyncpa [#allocation4], 1
    %s1748 = scalar_lea.sflag [#allocation4], 1
    %1749 = vsyncpa %s1748, 1

</llo_original>
